<compile_context>
chip_gen: v6e
topology: v6e:2x2x1
jax: 0.10.0
libtpu: 0.0.40
codegen_flags: <defaults>
</compile_context>

<pallas_src>
import math
import jax
import jax.numpy as jnp
from jax.experimental import pallas as pl
from jax.experimental.pallas import tpu as pltpu


# ---------------------------------------------------------------------------
# configuration (small, deterministic)
# ---------------------------------------------------------------------------
N = 2            # batch
L = 8            # sequence length
E = 32           # embed_size
H = 4            # heads
HD = E // H      # head_dim = 8
FE = 2           # forward_expansion
HIDDEN = E * FE  # 64
NL = N * L       # 16 rows, batch*seq folded into the sublane dim
LN_EPS = 1e-5


def _layernorm(x, w, b):
    mu = jnp.mean(x, axis=-1, keepdims=True)
    var = jnp.mean((x - mu) * (x - mu), axis=-1, keepdims=True)
    return (x - mu) * jax.lax.rsqrt(var + LN_EPS) * w + b


# ---------------------------------------------------------------------------
# Pallas kernel: whole transformer block for a slice of the batch
# ---------------------------------------------------------------------------
def transformer_block_kernel(slab_ref, mask_ref, wqkv_ref, fcw1_ref, w2_ref,
                             vec_ref, o_ref, ctx_scratch):
    nb_l = slab_ref.shape[0]          # rows handled by this grid program (= NB*L)
    nb = nb_l // L                    # batches handled by this grid program

    slab = slab_ref[...]              # (NB*L, 3E) lane-dense [V | K | Q]
    q_resid = slab[:, 2 * E:3 * E]    # raw query, residual path

    # Q/K/V projections for ALL heads & batches: ONE MXU dot with K = 3E.
    # wqkv = block-diag(kron(I_H, Wv^T), kron(I_H, Wk^T), kron(I_H, Wq^T)/sqrt(E)).
    proj = jnp.dot(slab, wqkv_ref[...], preferred_element_type=jnp.float32)
    vp = proj[:, 0:E]
    kp = proj[:, E:2 * E]
    qp = proj[:, 2 * E:3 * E]         # 1/sqrt(E) scale already folded into the weight

    # per-(batch, head) views for batched attention, b = n*H + h -> (NB*H, L, HD)
    def heads(x):
        return jnp.stack([x[n * L:(n + 1) * L, h * HD:(h + 1) * HD]
                          for n in range(nb) for h in range(H)], axis=0)

    vh = heads(vp)
    kh = heads(kp)
    qh = heads(qp)

    # batched attention over the (batch, head) axis — one dot_general each
    energy = jnp.einsum('bqd,bkd->bqk', qh, kh,
                        preferred_element_type=jnp.float32)          # (NB*H, L, L)
    maskv = mask_ref[...]                                            # (NB, L, L)
    maskb = jnp.stack([maskv[n] for n in range(nb) for _ in range(H)], axis=0)
    energy = jnp.where(maskb == 0.0, jnp.float32(-1e20), energy)
    emax = jnp.max(energy, axis=-1, keepdims=True)
    p = jnp.exp(energy - emax)
    denom = jnp.sum(p, axis=-1, keepdims=True)
    # exact divide (nothing VALU/EUP-bound at this size); use
    # pl.reciprocal(denom, approx=True) only once demonstrably VALU-limited.
    attn = p / denom
    ctx = jnp.einsum('bqk,bkd->bqd', attn, vh,
                     preferred_element_type=jnp.float32)             # (NB*H, L, HD)

    # reassemble a lane-dense (NB*L, E) context (heads along lanes) in scratch,
    # then fc_out is ONE (NB*L, E) @ (E, E) dot — no per-head accumulation chain.
    for n in range(nb):
        for h in range(H):
            ctx_scratch[n * L:(n + 1) * L, h * HD:(h + 1) * HD] = ctx[n * H + h]
    ctx_flat = ctx_scratch[...]

    fcw1 = fcw1_ref[...]              # (E, E + HIDDEN) = [Wfc^T | W1^T]
    wfc_t = fcw1[:, 0:E]
    w1_t = fcw1[:, E:]
    attn_out = jnp.dot(ctx_flat, wfc_t, preferred_element_type=jnp.float32)

    # packed LN weights / biases
    vecs = vec_ref[...]               # (8, HIDDEN)
    ln1w, ln1b = vecs[0:1, :E], vecs[1:2, :E]
    ln2w, ln2b = vecs[2:3, :E], vecs[3:4, :E]
    b2 = vecs[4:5, :E]
    b1 = vecs[5:6, :]

    # residual + LayerNorm 1  (dropout == identity)
    x = _layernorm(attn_out + q_resid, ln1w, ln1b)                   # (NB*L, E)

    # feed-forward: Linear -> ReLU -> Linear
    hid = jnp.maximum(jnp.dot(x, w1_t, preferred_element_type=jnp.float32) + b1, 0.0)
    ff = jnp.dot(hid, w2_ref[...], preferred_element_type=jnp.float32) + b2

    # residual + LayerNorm 2  (dropout == identity)
    # NOTE: (NB*L, E)=(8..16, 32) output ends in masked stores; at real sizes
    # keep the out BlockSpec last dim a multiple of 128 for unmasked vst.
    o_ref[...] = _layernorm(ff + x, ln2w, ln2b)


# ---------------------------------------------------------------------------
# per-layer constant packing (run ONCE at parameter-load time, off the hot path)
# ---------------------------------------------------------------------------
def pack_params(params):
    (wv, wk, wq, wfc, ln1w, ln1b, ln2w, ln2b, w1, b1, w2, b2) = params
    scale = 1.0 / math.sqrt(E)            # reference divides energy by embed_size**0.5

    eye_h = jnp.eye(H, dtype=jnp.float32)
    bd = lambda w: jnp.kron(eye_h, w.T)   # x @ bd(w)  ==  per-head x_h @ w.T
    z = jnp.zeros((E, E), jnp.float32)
    wqkv = jnp.concatenate([
        jnp.concatenate([bd(wv), z, z], axis=1),
        jnp.concatenate([z, bd(wk), z], axis=1),
        jnp.concatenate([z, z, bd(wq) * scale], axis=1)], axis=0)    # (3E, 3E)

    fcw1 = jnp.concatenate([wfc.T, w1.T], axis=1)                    # (E, E + HIDDEN)
    w2_t = w2.T                                                      # (HIDDEN, E)

    pad = lambda v: jnp.pad(v, (0, HIDDEN - v.shape[0]))
    vec_pack = jnp.stack([pad(ln1w), pad(ln1b), pad(ln2w), pad(ln2b),
                          pad(b2), b1,
                          jnp.zeros((HIDDEN,), jnp.float32),
                          jnp.zeros((HIDDEN,), jnp.float32)])        # (8, HIDDEN)
    return (wqkv, fcw1, w2_t, vec_pack)


def _default_grid_batches():
    # v7x has 2 TensorCores per chip: shard the batch across them.
    # v5e / v6e (single TC): single-step grid, no extra pipeline overhead.
    try:
        kind = jax.devices()[0].device_kind.lower()
    except Exception:
        return 1
    if ("v7" in kind or "7x" in kind) and N % 2 == 0:
        return 2
    return 1


# ---------------------------------------------------------------------------
# hot-path wrapper: reshape + one activation concat + a single pallas_call
# ---------------------------------------------------------------------------
def transformer_block(value, key, query, mask, packed, grid_batches=None):
    wqkv, fcw1, w2_t, vec_pack = packed
    g = grid_batches if grid_batches is not None else _default_grid_batches()
    assert N % g == 0
    nb = N // g

    # (N, L, E) -> (NL, E) is free; lane-concat gives one 96-lane-dense slab.
    slab = jnp.concatenate([value.reshape(NL, E), key.reshape(NL, E),
                            query.reshape(NL, E)], axis=1)           # (NL, 3E)

    out_flat = pl.pallas_call(
        transformer_block_kernel,
        out_shape=jax.ShapeDtypeStruct((NL, E), jnp.float32),
        grid=(g,),
        in_specs=[
            pl.BlockSpec((nb * L, 3 * E), lambda i: (i, 0)),         # activation slab
            pl.BlockSpec((nb, L, L), lambda i: (i, 0, 0)),           # mask (once, per batch)
            pl.BlockSpec((3 * E, 3 * E), lambda i: (0, 0)),          # qkv block-diag weight
            pl.BlockSpec((E, E + HIDDEN), lambda i: (0, 0)),         # [Wfc^T | W1^T]
            pl.BlockSpec((HIDDEN, E), lambda i: (0, 0)),             # W2^T
            pl.BlockSpec((8, HIDDEN), lambda i: (0, 0)),             # LN / bias vectors
        ],
        out_specs=pl.BlockSpec((nb * L, E), lambda i: (i, 0)),
        scratch_shapes=[pltpu.VMEM((nb * L, E), jnp.float32)],       # lane-dense context
        compiler_params=pltpu.CompilerParams(
            dimension_semantics=("parallel",)),
    )(slab, mask, wqkv, fcw1, w2_t, vec_pack)
    return out_flat.reshape(N, L, E)


# ---------------------------------------------------------------------------
# pure-JAX reference (same math, PyTorch-style) for a correctness check
# ---------------------------------------------------------------------------
def reference(value, key, query, mask, params):
    (wv, wk, wq, wfc, ln1w, ln1b, ln2w, ln2b, w1, b1, w2, b2) = params

    def ln(x, w, b):
        mu = x.mean(-1, keepdims=True)
        var = ((x - mu) ** 2).mean(-1, keepdims=True)
        return (x - mu) / jnp.sqrt(var + LN_EPS) * w + b

    vr = value.reshape(N, L, H, HD) @ wv.T
    kr = key.reshape(N, L, H, HD) @ wk.T
    qr = query.reshape(N, L, H, HD) @ wq.T
    energy = jnp.einsum('nqhd,nkhd->nhqk', qr, kr)
    energy = jnp.where(mask[:, None, :, :] == 0, -1e20, energy)
    attn = jax.nn.softmax(energy / math.sqrt(E), axis=3)
    out = jnp.einsum('nhqk,nkhd->nqhd', attn, vr).reshape(N, L, E)
    attn_out = out @ wfc.T
    x = ln(attn_out + query, ln1w, ln1b)
    ff = jnp.maximum(x @ w1.T + b1, 0.0) @ w2.T + b2
    return ln(ff + x, ln2w, ln2b)


# ---------------------------------------------------------------------------
if __name__ == "__main__":
    root = jax.random.PRNGKey(0)
    keys = jax.random.split(root, 16)

    # deterministic parameter init (synthetic; shapes per the module __init__)
    wv = jax.random.normal(keys[0], (HD, HD), jnp.float32) * 0.1
    wk = jax.random.normal(keys[1], (HD, HD), jnp.float32) * 0.1
    wq = jax.random.normal(keys[2], (HD, HD), jnp.float32) * 0.1
    wfc = jax.random.normal(keys[3], (E, E), jnp.float32) * 0.1
    ln1w = jnp.ones((E,), jnp.float32)
    ln1b = jnp.zeros((E,), jnp.float32)
    ln2w = jnp.ones((E,), jnp.float32)
    ln2b = jnp.zeros((E,), jnp.float32)
    w1 = jax.random.normal(keys[4], (HIDDEN, E), jnp.float32) * 0.1
    b1 = jax.random.normal(keys[5], (HIDDEN,), jnp.float32) * 0.1
    w2 = jax.random.normal(keys[6], (E, HIDDEN), jnp.float32) * 0.1
    b2 = jax.random.normal(keys[7], (E,), jnp.float32) * 0.1
    params = (wv, wk, wq, wfc, ln1w, ln1b, ln2w, ln2b, w1, b1, w2, b2)

    # pack per-layer constants ONCE (off the hot path)
    packed = jax.tree_util.tree_map(jax.block_until_ready, pack_params(params))

    # inputs
    value = jax.random.normal(keys[8], (N, L, E), jnp.float32)
    key = jax.random.normal(keys[9], (N, L, E), jnp.float32)
    query = jax.random.normal(keys[10], (N, L, E), jnp.float32)
    # causal mask (1 = keep, 0 = masked out), shape (N, Lq, Lk)
    mask = jnp.broadcast_to(
        jnp.tril(jnp.ones((L, L), jnp.float32)), (N, L, L))

    out = transformer_block(value, key, query, mask, packed)
    out = jax.block_until_ready(out)

    ref = reference(value, key, query, mask, params)
    assert out.shape == (N, L, E)
    err = jnp.max(jnp.abs(out - ref))
    assert jnp.allclose(out, ref, atol=1e-4, rtol=1e-4), f"max abs diff {err}"

    print("KERNEL_OK")
</pallas_src>

<mosaic_0001>
module attributes {stable_mosaic.version = 11 : i64} {
  func.func @transformer_block_kernel(%arg0: i32, %arg1: memref<16x96xf32, #tpu.memory_space<vmem>>, %arg2: memref<2x8x8xf32, #tpu.memory_space<vmem>>, %arg3: memref<96x96xf32, #tpu.memory_space<vmem>>, %arg4: memref<32x96xf32, #tpu.memory_space<vmem>>, %arg5: memref<64x32xf32, #tpu.memory_space<vmem>>, %arg6: memref<8x64xf32, #tpu.memory_space<vmem>>, %arg7: memref<16x32xf32, #tpu.memory_space<vmem>>, %arg8: memref<16x32xf32, #tpu.memory_space<vmem>>) attributes {dimension_semantics = [#tpu.dimension_semantics<parallel>], iteration_bounds = array<i64: 1>, scalar_prefetch = 0 : i64, scratch_operands = 1 : i64, tpu.core_type = #tpu.core_type<tc>, window_params = [{transform_indices = @transform_0, window_bounds = array<i64: 16, 96>}, {transform_indices = @transform_1, window_bounds = array<i64: 2, 8, 8>}, {pipeline_mode = #tpu.pipeline_mode<synchronous>, transform_indices = @transform_2, window_bounds = array<i64: 96, 96>}, {pipeline_mode = #tpu.pipeline_mode<synchronous>, transform_indices = @transform_3, window_bounds = array<i64: 32, 96>}, {pipeline_mode = #tpu.pipeline_mode<synchronous>, transform_indices = @transform_4, window_bounds = array<i64: 64, 32>}, {pipeline_mode = #tpu.pipeline_mode<synchronous>, transform_indices = @transform_5, window_bounds = array<i64: 8, 64>}, {transform_indices = @transform_6, window_bounds = array<i64: 16, 32>}]} {
    %c0 = arith.constant 0 : index
    %c0_0 = arith.constant 0 : index
    %0 = vector.load %arg1[%c0, %c0_0] : memref<16x96xf32, #tpu.memory_space<vmem>>, vector<16x96xf32>
    %1 = vector.extract_strided_slice %0 {offsets = [0, 64], sizes = [16, 32], strides = [1, 1]} : vector<16x96xf32> to vector<16x32xf32>
    %c0_1 = arith.constant 0 : index
    %c0_2 = arith.constant 0 : index
    %2 = vector.load %arg3[%c0_1, %c0_2] : memref<96x96xf32, #tpu.memory_space<vmem>>, vector<96x96xf32>
    %cst = arith.constant dense<0.000000e+00> : vector<16x96xf32>
    %3 = tpu.matmul %0, %2, %cst {dimension_numbers = #tpu.dot_dimension_numbers<[1], [0], [0], [1], [0, 0, 1, 1], [], []>} : vector<16x96xf32>, vector<96x96xf32>, vector<16x96xf32> -> vector<16x96xf32>
    %4 = vector.extract_strided_slice %3 {offsets = [0, 0], sizes = [16, 32], strides = [1, 1]} : vector<16x96xf32> to vector<16x32xf32>
    %5 = vector.extract_strided_slice %3 {offsets = [0, 32], sizes = [16, 32], strides = [1, 1]} : vector<16x96xf32> to vector<16x32xf32>
    %6 = vector.extract_strided_slice %3 {offsets = [0, 64], sizes = [16, 32], strides = [1, 1]} : vector<16x96xf32> to vector<16x32xf32>
    %7 = vector.extract_strided_slice %4 {offsets = [0, 0], sizes = [8, 8], strides = [1, 1]} : vector<16x32xf32> to vector<8x8xf32>
    %8 = vector.extract_strided_slice %4 {offsets = [0, 8], sizes = [8, 8], strides = [1, 1]} : vector<16x32xf32> to vector<8x8xf32>
    %9 = vector.extract_strided_slice %4 {offsets = [0, 16], sizes = [8, 8], strides = [1, 1]} : vector<16x32xf32> to vector<8x8xf32>
    %10 = vector.extract_strided_slice %4 {offsets = [0, 24], sizes = [8, 8], strides = [1, 1]} : vector<16x32xf32> to vector<8x8xf32>
    %11 = vector.extract_strided_slice %4 {offsets = [8, 0], sizes = [8, 8], strides = [1, 1]} : vector<16x32xf32> to vector<8x8xf32>
    %12 = vector.extract_strided_slice %4 {offsets = [8, 8], sizes = [8, 8], strides = [1, 1]} : vector<16x32xf32> to vector<8x8xf32>
    %13 = vector.extract_strided_slice %4 {offsets = [8, 16], sizes = [8, 8], strides = [1, 1]} : vector<16x32xf32> to vector<8x8xf32>
    %14 = vector.extract_strided_slice %4 {offsets = [8, 24], sizes = [8, 8], strides = [1, 1]} : vector<16x32xf32> to vector<8x8xf32>
    %15 = vector.shape_cast %7 : vector<8x8xf32> to vector<1x8x8xf32>
    %16 = vector.shape_cast %8 : vector<8x8xf32> to vector<1x8x8xf32>
    %17 = vector.shape_cast %9 : vector<8x8xf32> to vector<1x8x8xf32>
    %18 = vector.shape_cast %10 : vector<8x8xf32> to vector<1x8x8xf32>
    %19 = vector.shape_cast %11 : vector<8x8xf32> to vector<1x8x8xf32>
    %20 = vector.shape_cast %12 : vector<8x8xf32> to vector<1x8x8xf32>
    %21 = vector.shape_cast %13 : vector<8x8xf32> to vector<1x8x8xf32>
    %22 = vector.shape_cast %14 : vector<8x8xf32> to vector<1x8x8xf32>
    %23 = tpu.concatenate %15, %16, %17, %18, %19, %20, %21, %22 in 0 : vector<1x8x8xf32>, vector<1x8x8xf32>, vector<1x8x8xf32>, vector<1x8x8xf32>, vector<1x8x8xf32>, vector<1x8x8xf32>, vector<1x8x8xf32>, vector<1x8x8xf32> -> vector<8x8x8xf32>
    %24 = vector.extract_strided_slice %5 {offsets = [0, 0], sizes = [8, 8], strides = [1, 1]} : vector<16x32xf32> to vector<8x8xf32>
    %25 = vector.extract_strided_slice %5 {offsets = [0, 8], sizes = [8, 8], strides = [1, 1]} : vector<16x32xf32> to vector<8x8xf32>
    %26 = vector.extract_strided_slice %5 {offsets = [0, 16], sizes = [8, 8], strides = [1, 1]} : vector<16x32xf32> to vector<8x8xf32>
    %27 = vector.extract_strided_slice %5 {offsets = [0, 24], sizes = [8, 8], strides = [1, 1]} : vector<16x32xf32> to vector<8x8xf32>
    %28 = vector.extract_strided_slice %5 {offsets = [8, 0], sizes = [8, 8], strides = [1, 1]} : vector<16x32xf32> to vector<8x8xf32>
    %29 = vector.extract_strided_slice %5 {offsets = [8, 8], sizes = [8, 8], strides = [1, 1]} : vector<16x32xf32> to vector<8x8xf32>
    %30 = vector.extract_strided_slice %5 {offsets = [8, 16], sizes = [8, 8], strides = [1, 1]} : vector<16x32xf32> to vector<8x8xf32>
    %31 = vector.extract_strided_slice %5 {offsets = [8, 24], sizes = [8, 8], strides = [1, 1]} : vector<16x32xf32> to vector<8x8xf32>
    %32 = vector.shape_cast %24 : vector<8x8xf32> to vector<1x8x8xf32>
    %33 = vector.shape_cast %25 : vector<8x8xf32> to vector<1x8x8xf32>
    %34 = vector.shape_cast %26 : vector<8x8xf32> to vector<1x8x8xf32>
    %35 = vector.shape_cast %27 : vector<8x8xf32> to vector<1x8x8xf32>
    %36 = vector.shape_cast %28 : vector<8x8xf32> to vector<1x8x8xf32>
    %37 = vector.shape_cast %29 : vector<8x8xf32> to vector<1x8x8xf32>
    %38 = vector.shape_cast %30 : vector<8x8xf32> to vector<1x8x8xf32>
    %39 = vector.shape_cast %31 : vector<8x8xf32> to vector<1x8x8xf32>
    %40 = tpu.concatenate %32, %33, %34, %35, %36, %37, %38, %39 in 0 : vector<1x8x8xf32>, vector<1x8x8xf32>, vector<1x8x8xf32>, vector<1x8x8xf32>, vector<1x8x8xf32>, vector<1x8x8xf32>, vector<1x8x8xf32>, vector<1x8x8xf32> -> vector<8x8x8xf32>
    %41 = vector.extract_strided_slice %6 {offsets = [0, 0], sizes = [8, 8], strides = [1, 1]} : vector<16x32xf32> to vector<8x8xf32>
    %42 = vector.extract_strided_slice %6 {offsets = [0, 8], sizes = [8, 8], strides = [1, 1]} : vector<16x32xf32> to vector<8x8xf32>
    %43 = vector.extract_strided_slice %6 {offsets = [0, 16], sizes = [8, 8], strides = [1, 1]} : vector<16x32xf32> to vector<8x8xf32>
    %44 = vector.extract_strided_slice %6 {offsets = [0, 24], sizes = [8, 8], strides = [1, 1]} : vector<16x32xf32> to vector<8x8xf32>
    %45 = vector.extract_strided_slice %6 {offsets = [8, 0], sizes = [8, 8], strides = [1, 1]} : vector<16x32xf32> to vector<8x8xf32>
    %46 = vector.extract_strided_slice %6 {offsets = [8, 8], sizes = [8, 8], strides = [1, 1]} : vector<16x32xf32> to vector<8x8xf32>
    %47 = vector.extract_strided_slice %6 {offsets = [8, 16], sizes = [8, 8], strides = [1, 1]} : vector<16x32xf32> to vector<8x8xf32>
    %48 = vector.extract_strided_slice %6 {offsets = [8, 24], sizes = [8, 8], strides = [1, 1]} : vector<16x32xf32> to vector<8x8xf32>
    %49 = vector.shape_cast %41 : vector<8x8xf32> to vector<1x8x8xf32>
    %50 = vector.shape_cast %42 : vector<8x8xf32> to vector<1x8x8xf32>
    %51 = vector.shape_cast %43 : vector<8x8xf32> to vector<1x8x8xf32>
    %52 = vector.shape_cast %44 : vector<8x8xf32> to vector<1x8x8xf32>
    %53 = vector.shape_cast %45 : vector<8x8xf32> to vector<1x8x8xf32>
    %54 = vector.shape_cast %46 : vector<8x8xf32> to vector<1x8x8xf32>
    %55 = vector.shape_cast %47 : vector<8x8xf32> to vector<1x8x8xf32>
    %56 = vector.shape_cast %48 : vector<8x8xf32> to vector<1x8x8xf32>
    %57 = tpu.concatenate %49, %50, %51, %52, %53, %54, %55, %56 in 0 : vector<1x8x8xf32>, vector<1x8x8xf32>, vector<1x8x8xf32>, vector<1x8x8xf32>, vector<1x8x8xf32>, vector<1x8x8xf32>, vector<1x8x8xf32>, vector<1x8x8xf32> -> vector<8x8x8xf32>
    "tpu.trace_start"() <{level = 10 : i32, message = "bqd,bkd->bqk"}> : () -> ()
    %cst_3 = arith.constant dense<0.000000e+00> : vector<8x8x8xf32>
    %58 = tpu.matmul %57, %40, %cst_3 {dimension_numbers = #tpu.dot_dimension_numbers<[2], [2], [1], [1], [0, 0, 0, 1, 1, 1], [0], [0]>} : vector<8x8x8xf32>, vector<8x8x8xf32>, vector<8x8x8xf32> -> vector<8x8x8xf32>
    "tpu.trace_stop"() : () -> ()
    %c0_4 = arith.constant 0 : index
    %c0_5 = arith.constant 0 : index
    %c0_6 = arith.constant 0 : index
    %59 = vector.load %arg2[%c0_4, %c0_5, %c0_6] : memref<2x8x8xf32, #tpu.memory_space<vmem>>, vector<2x8x8xf32>
    %60 = vector.extract_strided_slice %59 {offsets = [0, 0, 0], sizes = [1, 8, 8], strides = [1, 1, 1]} : vector<2x8x8xf32> to vector<1x8x8xf32>
    %61 = vector.shape_cast %60 : vector<1x8x8xf32> to vector<8x8xf32>
    %62 = vector.extract_strided_slice %59 {offsets = [0, 0, 0], sizes = [1, 8, 8], strides = [1, 1, 1]} : vector<2x8x8xf32> to vector<1x8x8xf32>
    %63 = vector.shape_cast %62 : vector<1x8x8xf32> to vector<8x8xf32>
    %64 = vector.extract_strided_slice %59 {offsets = [0, 0, 0], sizes = [1, 8, 8], strides = [1, 1, 1]} : vector<2x8x8xf32> to vector<1x8x8xf32>
    %65 = vector.shape_cast %64 : vector<1x8x8xf32> to vector<8x8xf32>
    %66 = vector.extract_strided_slice %59 {offsets = [0, 0, 0], sizes = [1, 8, 8], strides = [1, 1, 1]} : vector<2x8x8xf32> to vector<1x8x8xf32>
    %67 = vector.shape_cast %66 : vector<1x8x8xf32> to vector<8x8xf32>
    %68 = vector.extract_strided_slice %59 {offsets = [1, 0, 0], sizes = [1, 8, 8], strides = [1, 1, 1]} : vector<2x8x8xf32> to vector<1x8x8xf32>
    %69 = vector.shape_cast %68 : vector<1x8x8xf32> to vector<8x8xf32>
    %70 = vector.extract_strided_slice %59 {offsets = [1, 0, 0], sizes = [1, 8, 8], strides = [1, 1, 1]} : vector<2x8x8xf32> to vector<1x8x8xf32>
    %71 = vector.shape_cast %70 : vector<1x8x8xf32> to vector<8x8xf32>
    %72 = vector.extract_strided_slice %59 {offsets = [1, 0, 0], sizes = [1, 8, 8], strides = [1, 1, 1]} : vector<2x8x8xf32> to vector<1x8x8xf32>
    %73 = vector.shape_cast %72 : vector<1x8x8xf32> to vector<8x8xf32>
    %74 = vector.extract_strided_slice %59 {offsets = [1, 0, 0], sizes = [1, 8, 8], strides = [1, 1, 1]} : vector<2x8x8xf32> to vector<1x8x8xf32>
    %75 = vector.shape_cast %74 : vector<1x8x8xf32> to vector<8x8xf32>
    %76 = vector.shape_cast %61 : vector<8x8xf32> to vector<1x8x8xf32>
    %77 = vector.shape_cast %63 : vector<8x8xf32> to vector<1x8x8xf32>
    %78 = vector.shape_cast %65 : vector<8x8xf32> to vector<1x8x8xf32>
    %79 = vector.shape_cast %67 : vector<8x8xf32> to vector<1x8x8xf32>
    %80 = vector.shape_cast %69 : vector<8x8xf32> to vector<1x8x8xf32>
    %81 = vector.shape_cast %71 : vector<8x8xf32> to vector<1x8x8xf32>
    %82 = vector.shape_cast %73 : vector<8x8xf32> to vector<1x8x8xf32>
    %83 = vector.shape_cast %75 : vector<8x8xf32> to vector<1x8x8xf32>
    %84 = tpu.concatenate %76, %77, %78, %79, %80, %81, %82, %83 in 0 : vector<1x8x8xf32>, vector<1x8x8xf32>, vector<1x8x8xf32>, vector<1x8x8xf32>, vector<1x8x8xf32>, vector<1x8x8xf32>, vector<1x8x8xf32>, vector<1x8x8xf32> -> vector<8x8x8xf32>
    %cst_7 = arith.constant 0.000000e+00 : f32
    %85 = vector.broadcast %cst_7 : f32 to vector<8x8x8xf32>
    %86 = arith.cmpf oeq, %84, %85 : vector<8x8x8xf32>
    %cst_8 = arith.constant -1.000000e+20 : f32
    %87 = vector.broadcast %cst_8 : f32 to vector<8x8x8xf32>
    %88 = arith.select %86, %87, %58 : vector<8x8x8xi1>, vector<8x8x8xf32>
    %cst_9 = arith.constant dense<0xFF800000> : vector<8x8xf32>
    %89 = vector.multi_reduction <maximumf>, %88, %cst_9 [2] : vector<8x8x8xf32> to vector<8x8xf32>
    %90 = vector.shape_cast %89 : vector<8x8xf32> to vector<8x8x1xf32>
    %91 = vector.broadcast %90 : vector<8x8x1xf32> to vector<8x8x8xf32>
    %92 = arith.subf %88, %91 : vector<8x8x8xf32>
    %93 = math.exp %92 : vector<8x8x8xf32>
    %cst_10 = arith.constant dense<0.000000e+00> : vector<8x8xf32>
    %94 = vector.multi_reduction <add>, %93, %cst_10 [2] : vector<8x8x8xf32> to vector<8x8xf32>
    %95 = vector.shape_cast %94 : vector<8x8xf32> to vector<8x8x1xf32>
    %96 = vector.broadcast %95 : vector<8x8x1xf32> to vector<8x8x8xf32>
    %97 = arith.divf %93, %96 : vector<8x8x8xf32>
    "tpu.trace_start"() <{level = 10 : i32, message = "bqk,bkd->bqd"}> : () -> ()
    %cst_11 = arith.constant dense<0.000000e+00> : vector<8x8x8xf32>
    %98 = tpu.matmul %97, %23, %cst_11 {dimension_numbers = #tpu.dot_dimension_numbers<[2], [1], [1], [2], [0, 0, 0, 1, 1, 2], [0], [0]>} : vector<8x8x8xf32>, vector<8x8x8xf32>, vector<8x8x8xf32> -> vector<8x8x8xf32>
    "tpu.trace_stop"() : () -> ()
    %99 = vector.extract_strided_slice %98 {offsets = [0, 0, 0], sizes = [1, 8, 8], strides = [1, 1, 1]} : vector<8x8x8xf32> to vector<1x8x8xf32>
    %100 = vector.shape_cast %99 : vector<1x8x8xf32> to vector<8x8xf32>
    %c0_12 = arith.constant 0 : index
    %c0_13 = arith.constant 0 : index
    %101 = vector.load %arg8[%c0_12, %c0_13] : memref<16x32xf32, #tpu.memory_space<vmem>>, vector<8x8xf32>
    tpu.vector_store %arg8[%c0_12, %c0_13], %100 {strides = array<i32>} : memref<16x32xf32, #tpu.memory_space<vmem>>, vector<8x8xf32>,
    %102 = vector.extract_strided_slice %98 {offsets = [1, 0, 0], sizes = [1, 8, 8], strides = [1, 1, 1]} : vector<8x8x8xf32> to vector<1x8x8xf32>
    %103 = vector.shape_cast %102 : vector<1x8x8xf32> to vector<8x8xf32>
    %c0_14 = arith.constant 0 : index
    %c8 = arith.constant 8 : index
    %104 = vector.load %arg8[%c0_14, %c8] : memref<16x32xf32, #tpu.memory_space<vmem>>, vector<8x8xf32>
    tpu.vector_store %arg8[%c0_14, %c8], %103 {strides = array<i32>} : memref<16x32xf32, #tpu.memory_space<vmem>>, vector<8x8xf32>,
    %105 = vector.extract_strided_slice %98 {offsets = [2, 0, 0], sizes = [1, 8, 8], strides = [1, 1, 1]} : vector<8x8x8xf32> to vector<1x8x8xf32>
    %106 = vector.shape_cast %105 : vector<1x8x8xf32> to vector<8x8xf32>
    %c0_15 = arith.constant 0 : index
    %c16 = arith.constant 16 : index
    %107 = vector.load %arg8[%c0_15, %c16] : memref<16x32xf32, #tpu.memory_space<vmem>>, vector<8x8xf32>
    tpu.vector_store %arg8[%c0_15, %c16], %106 {strides = array<i32>} : memref<16x32xf32, #tpu.memory_space<vmem>>, vector<8x8xf32>,
    %108 = vector.extract_strided_slice %98 {offsets = [3, 0, 0], sizes = [1, 8, 8], strides = [1, 1, 1]} : vector<8x8x8xf32> to vector<1x8x8xf32>
    %109 = vector.shape_cast %108 : vector<1x8x8xf32> to vector<8x8xf32>
    %c0_16 = arith.constant 0 : index
    %c24 = arith.constant 24 : index
    %110 = vector.load %arg8[%c0_16, %c24] : memref<16x32xf32, #tpu.memory_space<vmem>>, vector<8x8xf32>
    tpu.vector_store %arg8[%c0_16, %c24], %109 {strides = array<i32>} : memref<16x32xf32, #tpu.memory_space<vmem>>, vector<8x8xf32>,
    %111 = vector.extract_strided_slice %98 {offsets = [4, 0, 0], sizes = [1, 8, 8], strides = [1, 1, 1]} : vector<8x8x8xf32> to vector<1x8x8xf32>
    %112 = vector.shape_cast %111 : vector<1x8x8xf32> to vector<8x8xf32>
    %c8_17 = arith.constant 8 : index
    %c0_18 = arith.constant 0 : index
    %113 = vector.load %arg8[%c8_17, %c0_18] : memref<16x32xf32, #tpu.memory_space<vmem>>, vector<8x8xf32>
    tpu.vector_store %arg8[%c8_17, %c0_18], %112 {strides = array<i32>} : memref<16x32xf32, #tpu.memory_space<vmem>>, vector<8x8xf32>,
    %114 = vector.extract_strided_slice %98 {offsets = [5, 0, 0], sizes = [1, 8, 8], strides = [1, 1, 1]} : vector<8x8x8xf32> to vector<1x8x8xf32>
    %115 = vector.shape_cast %114 : vector<1x8x8xf32> to vector<8x8xf32>
    %c8_19 = arith.constant 8 : index
    %c8_20 = arith.constant 8 : index
    %116 = vector.load %arg8[%c8_19, %c8_20] : memref<16x32xf32, #tpu.memory_space<vmem>>, vector<8x8xf32>
    tpu.vector_store %arg8[%c8_19, %c8_20], %115 {strides = array<i32>} : memref<16x32xf32, #tpu.memory_space<vmem>>, vector<8x8xf32>,
    %117 = vector.extract_strided_slice %98 {offsets = [6, 0, 0], sizes = [1, 8, 8], strides = [1, 1, 1]} : vector<8x8x8xf32> to vector<1x8x8xf32>
    %118 = vector.shape_cast %117 : vector<1x8x8xf32> to vector<8x8xf32>
    %c8_21 = arith.constant 8 : index
    %c16_22 = arith.constant 16 : index
    %119 = vector.load %arg8[%c8_21, %c16_22] : memref<16x32xf32, #tpu.memory_space<vmem>>, vector<8x8xf32>
    tpu.vector_store %arg8[%c8_21, %c16_22], %118 {strides = array<i32>} : memref<16x32xf32, #tpu.memory_space<vmem>>, vector<8x8xf32>,
    %120 = vector.extract_strided_slice %98 {offsets = [7, 0, 0], sizes = [1, 8, 8], strides = [1, 1, 1]} : vector<8x8x8xf32> to vector<1x8x8xf32>
    %121 = vector.shape_cast %120 : vector<1x8x8xf32> to vector<8x8xf32>
    %c8_23 = arith.constant 8 : index
    %c24_24 = arith.constant 24 : index
    %122 = vector.load %arg8[%c8_23, %c24_24] : memref<16x32xf32, #tpu.memory_space<vmem>>, vector<8x8xf32>
    tpu.vector_store %arg8[%c8_23, %c24_24], %121 {strides = array<i32>} : memref<16x32xf32, #tpu.memory_space<vmem>>, vector<8x8xf32>,
    %c0_25 = arith.constant 0 : index
    %c0_26 = arith.constant 0 : index
    %123 = vector.load %arg8[%c0_25, %c0_26] : memref<16x32xf32, #tpu.memory_space<vmem>>, vector<16x32xf32>
    %c0_27 = arith.constant 0 : index
    %c0_28 = arith.constant 0 : index
    %124 = vector.load %arg4[%c0_27, %c0_28] : memref<32x96xf32, #tpu.memory_space<vmem>>, vector<32x96xf32>
    %125 = vector.extract_strided_slice %124 {offsets = [0, 0], sizes = [32, 32], strides = [1, 1]} : vector<32x96xf32> to vector<32x32xf32>
    %126 = vector.extract_strided_slice %124 {offsets = [0, 32], sizes = [32, 64], strides = [1, 1]} : vector<32x96xf32> to vector<32x64xf32>
    %cst_29 = arith.constant dense<0.000000e+00> : vector<16x32xf32>
    %127 = tpu.matmul %123, %125, %cst_29 {dimension_numbers = #tpu.dot_dimension_numbers<[1], [0], [0], [1], [0, 0, 1, 1], [], []>} : vector<16x32xf32>, vector<32x32xf32>, vector<16x32xf32> -> vector<16x32xf32>
    %c0_30 = arith.constant 0 : index
    %c0_31 = arith.constant 0 : index
    %128 = vector.load %arg6[%c0_30, %c0_31] : memref<8x64xf32, #tpu.memory_space<vmem>>, vector<8x64xf32>
    %129 = vector.extract_strided_slice %128 {offsets = [0, 0], sizes = [1, 32], strides = [1, 1]} : vector<8x64xf32> to vector<1x32xf32>
    %130 = vector.extract_strided_slice %128 {offsets = [1, 0], sizes = [1, 32], strides = [1, 1]} : vector<8x64xf32> to vector<1x32xf32>
    %131 = vector.extract_strided_slice %128 {offsets = [2, 0], sizes = [1, 32], strides = [1, 1]} : vector<8x64xf32> to vector<1x32xf32>
    %132 = vector.extract_strided_slice %128 {offsets = [3, 0], sizes = [1, 32], strides = [1, 1]} : vector<8x64xf32> to vector<1x32xf32>
    %133 = vector.extract_strided_slice %128 {offsets = [4, 0], sizes = [1, 32], strides = [1, 1]} : vector<8x64xf32> to vector<1x32xf32>
    %134 = vector.extract_strided_slice %128 {offsets = [5, 0], sizes = [1, 64], strides = [1, 1]} : vector<8x64xf32> to vector<1x64xf32>
    %135 = arith.addf %127, %1 : vector<16x32xf32>
    %cst_32 = arith.constant dense<0.000000e+00> : vector<16xf32>
    %136 = vector.multi_reduction <add>, %135, %cst_32 [1] : vector<16x32xf32> to vector<16xf32>
    %137 = vector.shape_cast %136 : vector<16xf32> to vector<16x1xf32>
    %cst_33 = arith.constant 3.200000e+01 : f32
    %138 = vector.broadcast %cst_33 : f32 to vector<16x1xf32>
    %139 = arith.divf %137, %138 : vector<16x1xf32>
    %140 = vector.broadcast %139 : vector<16x1xf32> to vector<16x32xf32>
    %141 = arith.subf %135, %140 : vector<16x32xf32>
    %142 = vector.broadcast %139 : vector<16x1xf32> to vector<16x32xf32>
    %143 = arith.subf %135, %142 : vector<16x32xf32>
    %144 = arith.mulf %141, %143 : vector<16x32xf32>
    %cst_34 = arith.constant dense<0.000000e+00> : vector<16xf32>
    %145 = vector.multi_reduction <add>, %144, %cst_34 [1] : vector<16x32xf32> to vector<16xf32>
    %146 = vector.shape_cast %145 : vector<16xf32> to vector<16x1xf32>
    %cst_35 = arith.constant 3.200000e+01 : f32
    %147 = vector.broadcast %cst_35 : f32 to vector<16x1xf32>
    %148 = arith.divf %146, %147 : vector<16x1xf32>
    %149 = vector.broadcast %139 : vector<16x1xf32> to vector<16x32xf32>
    %150 = arith.subf %135, %149 : vector<16x32xf32>
    %cst_36 = arith.constant 9.99999974E-6 : f32
    %151 = vector.broadcast %cst_36 : f32 to vector<16x1xf32>
    %152 = arith.addf %148, %151 : vector<16x1xf32>
    %153 = math.rsqrt %152 : vector<16x1xf32>
    %154 = vector.broadcast %153 : vector<16x1xf32> to vector<16x32xf32>
    %155 = arith.mulf %150, %154 : vector<16x32xf32>
    %156 = vector.broadcast %129 : vector<1x32xf32> to vector<16x32xf32>
    %157 = arith.mulf %155, %156 : vector<16x32xf32>
    %158 = vector.broadcast %130 : vector<1x32xf32> to vector<16x32xf32>
    %159 = arith.addf %157, %158 : vector<16x32xf32>
    %cst_37 = arith.constant dense<0.000000e+00> : vector<16x64xf32>
    %160 = tpu.matmul %159, %126, %cst_37 {dimension_numbers = #tpu.dot_dimension_numbers<[1], [0], [0], [1], [0, 0, 1, 1], [], []>} : vector<16x32xf32>, vector<32x64xf32>, vector<16x64xf32> -> vector<16x64xf32>
    %161 = vector.broadcast %134 : vector<1x64xf32> to vector<16x64xf32>
    %162 = arith.addf %160, %161 : vector<16x64xf32>
    %cst_38 = arith.constant 0.000000e+00 : f32
    %163 = vector.broadcast %cst_38 : f32 to vector<16x64xf32>
    %164 = arith.maximumf %162, %163 : vector<16x64xf32>
    %c0_39 = arith.constant 0 : index
    %c0_40 = arith.constant 0 : index
    %165 = vector.load %arg5[%c0_39, %c0_40] : memref<64x32xf32, #tpu.memory_space<vmem>>, vector<64x32xf32>
    %cst_41 = arith.constant dense<0.000000e+00> : vector<16x32xf32>
    %166 = tpu.matmul %164, %165, %cst_41 {dimension_numbers = #tpu.dot_dimension_numbers<[1], [0], [0], [1], [0, 0, 1, 1], [], []>} : vector<16x64xf32>, vector<64x32xf32>, vector<16x32xf32> -> vector<16x32xf32>
    %167 = vector.broadcast %133 : vector<1x32xf32> to vector<16x32xf32>
    %168 = arith.addf %166, %167 : vector<16x32xf32>
    %169 = arith.addf %168, %159 : vector<16x32xf32>
    %cst_42 = arith.constant dense<0.000000e+00> : vector<16xf32>
    %170 = vector.multi_reduction <add>, %169, %cst_42 [1] : vector<16x32xf32> to vector<16xf32>
    %171 = vector.shape_cast %170 : vector<16xf32> to vector<16x1xf32>
    %cst_43 = arith.constant 3.200000e+01 : f32
    %172 = vector.broadcast %cst_43 : f32 to vector<16x1xf32>
    %173 = arith.divf %171, %172 : vector<16x1xf32>
    %174 = vector.broadcast %173 : vector<16x1xf32> to vector<16x32xf32>
    %175 = arith.subf %169, %174 : vector<16x32xf32>
    %176 = vector.broadcast %173 : vector<16x1xf32> to vector<16x32xf32>
    %177 = arith.subf %169, %176 : vector<16x32xf32>
    %178 = arith.mulf %175, %177 : vector<16x32xf32>
    %cst_44 = arith.constant dense<0.000000e+00> : vector<16xf32>
    %179 = vector.multi_reduction <add>, %178, %cst_44 [1] : vector<16x32xf32> to vector<16xf32>
    %180 = vector.shape_cast %179 : vector<16xf32> to vector<16x1xf32>
    %cst_45 = arith.constant 3.200000e+01 : f32
    %181 = vector.broadcast %cst_45 : f32 to vector<16x1xf32>
    %182 = arith.divf %180, %181 : vector<16x1xf32>
    %183 = vector.broadcast %173 : vector<16x1xf32> to vector<16x32xf32>
    %184 = arith.subf %169, %183 : vector<16x32xf32>
    %cst_46 = arith.constant 9.99999974E-6 : f32
    %185 = vector.broadcast %cst_46 : f32 to vector<16x1xf32>
    %186 = arith.addf %182, %185 : vector<16x1xf32>
    %187 = math.rsqrt %186 : vector<16x1xf32>
    %188 = vector.broadcast %187 : vector<16x1xf32> to vector<16x32xf32>
    %189 = arith.mulf %184, %188 : vector<16x32xf32>
    %190 = vector.broadcast %131 : vector<1x32xf32> to vector<16x32xf32>
    %191 = arith.mulf %189, %190 : vector<16x32xf32>
    %192 = vector.broadcast %132 : vector<1x32xf32> to vector<16x32xf32>
    %193 = arith.addf %191, %192 : vector<16x32xf32>
    %c0_47 = arith.constant 0 : index
    %c0_48 = arith.constant 0 : index
    %194 = vector.load %arg7[%c0_47, %c0_48] : memref<16x32xf32, #tpu.memory_space<vmem>>, vector<16x32xf32>
    tpu.vector_store %arg7[%c0_47, %c0_48], %193 {strides = array<i32>} : memref<16x32xf32, #tpu.memory_space<vmem>>, vector<16x32xf32>,
    return
  }
  func.func @transform_0(%arg0: i32) -> (i32, i32) {
    %c0_i32 = arith.constant 0 : i32
    %c0_i32_0 = arith.constant 0 : i32
    return %arg0, %c0_i32 : i32, i32
  }
  func.func @transform_1(%arg0: i32) -> (i32, i32, i32) {
    %c0_i32 = arith.constant 0 : i32
    %c0_i32_0 = arith.constant 0 : i32
    %c0_i32_1 = arith.constant 0 : i32
    return %arg0, %c0_i32, %c0_i32_0 : i32, i32, i32
  }
  func.func @transform_2(%arg0: i32) -> (i32, i32) {
    %c0_i32 = arith.constant 0 : i32
    %c0_i32_0 = arith.constant 0 : i32
    %c0_i32_1 = arith.constant 0 : i32
    return %c0_i32, %c0_i32_0 : i32, i32
  }
  func.func @transform_3(%arg0: i32) -> (i32, i32) {
    %c0_i32 = arith.constant 0 : i32
    %c0_i32_0 = arith.constant 0 : i32
    %c0_i32_1 = arith.constant 0 : i32
    return %c0_i32, %c0_i32_0 : i32, i32
  }
  func.func @transform_4(%arg0: i32) -> (i32, i32) {
    %c0_i32 = arith.constant 0 : i32
    %c0_i32_0 = arith.constant 0 : i32
    %c0_i32_1 = arith.constant 0 : i32
    return %c0_i32, %c0_i32_0 : i32, i32
  }
  func.func @transform_5(%arg0: i32) -> (i32, i32) {
    %c0_i32 = arith.constant 0 : i32
    %c0_i32_0 = arith.constant 0 : i32
    %c0_i32_1 = arith.constant 0 : i32
    return %c0_i32, %c0_i32_0 : i32, i32
  }
  func.func @transform_6(%arg0: i32) -> (i32, i32) {
    %c0_i32 = arith.constant 0 : i32
    %c0_i32_0 = arith.constant 0 : i32
    return %arg0, %c0_i32 : i32, i32
  }
}

</mosaic_0001>

<llo_original>
// kernel: tpu_custom_call.1
$region0: #{tpu_custom_call.1}
  #allocation0 [shape = 'u32[]', space=smem, size = 0x4, offset = 0x4, fixed_abs, tag = 'smem constant byte address 0x4 - core index']
  #allocation1 [shape = 'u32[144,128]{1,0:T(1,128)}', space=vmem, size = 0x12000, scoped, tag = 'internal scratch']
  #allocation2 [shape = 'f32[16,32]{1,0:T(8,128)}', space=vmem, size = 0x2000, scoped, tag = 'scratch operand']
  %s0 = inlined_call_operand.hbm [shape: f32[16,96], index: 0, kind: input, shape index: {}]
  %s1 = inlined_call_operand.hbm [shape: f32[2,8,8], index: 1, kind: input, shape index: {}]
  %s2 = inlined_call_operand.vmem [shape: f32[96,96], index: 2, kind: input, shape index: {}]
  %s3 = inlined_call_operand.hbm [shape: f32[32,96], index: 3, kind: input, shape index: {}]
  %s4 = inlined_call_operand.vmem [shape: f32[64,32], index: 4, kind: input, shape index: {}]
  %s5 = inlined_call_operand.vmem [shape: f32[8,64], index: 5, kind: input, shape index: {}]
  %s6 = inlined_call_operand.hbm [shape: f32[16,32], index: 6, kind: output, shape index: {}]
  %s7 = sld [smem:[#allocation0]]
  $region46: #{tpu_custom_call.1} parent=0
    _
  %s9 = ssub.s32 1, %s7
  %s10 = scalar_select 0, %s9, %s7
  $region1: #{tpu_custom_call.1} parent=0
    #allocation3 [shape = 'u8[8192]{0}', space=vmem, size = 0x2000, scoped, tag = 'input window, operand 0, single buffered']
    #allocation4 [shape = 's32[1]{0}', space=sflag, size = 0x4, scoped, tag = 'scoped memory for tpu_custom_call.1']
    #allocation5 [shape = 's32[1]{0}', space=sflag, size = 0x4, scoped, tag = 'scoped memory for tpu_custom_call.1']
    #allocation6 [shape = 'u8[8192]{0}', space=vmem, size = 0x2000, scoped, tag = 'input window, operand 1, single buffered']
    #allocation7 [shape = 's32[1]{0}', space=sflag, size = 0x4, scoped, tag = 'scoped memory for tpu_custom_call.1']
    #allocation8 [shape = 'u8[16384]{0}', space=vmem, size = 0x4000, scoped, tag = 'input window, operand 3, single buffered']
    #allocation9 [shape = 'u8[8192]{0}', space=vmem, size = 0x2000, scoped, tag = 'output window, operand 0, single buffered']
    %11 = vsyncpa [#allocation4], 0
    %12 = vsyncpa [#allocation7], 0
    %13 = vsyncpa [#allocation5], 0
    // Predicated region
    $region2: #{tpu_custom_call.1} parent=1 // pred_check
      _
    $region3: #{tpu_custom_call.1} parent=1 // pred_check_branch
      %15 = sbr.rel (0) target = $region5
    $region4: #{tpu_custom_call.1} parent=1 // pred_region
      %s17 = ssub.s32 256, 256
      %18 = vsyncadd [#allocation4], %s17
      %s19 = sshll.u32 [#allocation3], 4
      %s20 = int_to_ptr.vmem [resolvable:$true] %s19
      %25 = dma.hbm_to_vmem [thread:$0]  %s0, 256, %s20, [#allocation4], 128, 128, 8
    $region5: #{tpu_custom_call.1} parent=1 // pred_fallthru
      _
    // Predicated region
    $region6: #{tpu_custom_call.1} parent=1 // pred_check
      _
    $region7: #{tpu_custom_call.1} parent=1 // pred_check_branch
      %27 = sbr.rel (0) target = $region9
    $region8: #{tpu_custom_call.1} parent=1 // pred_region
      %s29 = ssub.s32 256, 256
      %30 = vsyncadd [#allocation7], %s29
      %s31 = sshll.u32 [#allocation6], 4
      %s32 = int_to_ptr.vmem [resolvable:$true] %s31
      %37 = dma.hbm_to_vmem [thread:$0]  %s1, 256, %s32, [#allocation7], 128, 128, 8
    $region9: #{tpu_custom_call.1} parent=1 // pred_fallthru
      _
    // Predicated region
    $region10: #{tpu_custom_call.1} parent=1 // pred_check
      _
    $region11: #{tpu_custom_call.1} parent=1 // pred_check_branch
      %39 = sbr.rel (0) target = $region13
    $region12: #{tpu_custom_call.1} parent=1 // pred_region
      _
    $region13: #{tpu_custom_call.1} parent=1 // pred_fallthru
      _
    // Predicated region
    $region14: #{tpu_custom_call.1} parent=1 // pred_check
      _
    $region15: #{tpu_custom_call.1} parent=1 // pred_check_branch
      %41 = sbr.rel (0) target = $region17
    $region16: #{tpu_custom_call.1} parent=1 // pred_region
      %s43 = ssub.s32 512, 512
      %44 = vsyncadd [#allocation7], %s43
      %s45 = sshll.u32 [#allocation8], 4
      %s46 = int_to_ptr.vmem [resolvable:$true] %s45
      %51 = dma.hbm_to_vmem [thread:$0]  %s3, 512, %s46, [#allocation7], 128, 128, 8
    $region17: #{tpu_custom_call.1} parent=1 // pred_fallthru
      _
    // Predicated region
    $region18: #{tpu_custom_call.1} parent=1 // pred_check
      _
    $region19: #{tpu_custom_call.1} parent=1 // pred_check_branch
      %53 = sbr.rel (0) target = $region21
    $region20: #{tpu_custom_call.1} parent=1 // pred_region
      _
    $region21: #{tpu_custom_call.1} parent=1 // pred_fallthru
      _
    // Predicated region
    $region22: #{tpu_custom_call.1} parent=1 // pred_check
      _
    $region23: #{tpu_custom_call.1} parent=1 // pred_check_branch
      %55 = sbr.rel (0) target = $region25
    $region24: #{tpu_custom_call.1} parent=1 // pred_region
      _
    $region25: #{tpu_custom_call.1} parent=1 // pred_fallthru
      _
    // Predicated region
    $region26: #{tpu_custom_call.1} parent=1 // pred_check
      _
    $region27: #{tpu_custom_call.1} parent=1 // pred_check_branch
      %57 = sbr.rel (0) target = $region29
    $region28: #{tpu_custom_call.1} parent=1 // pred_region
      %58 = dma.done [#allocation4], 256
    $region29: #{tpu_custom_call.1} parent=1 // pred_fallthru
      _
    // Predicated region
    $region30: #{tpu_custom_call.1} parent=1 // pred_check
      _
    $region31: #{tpu_custom_call.1} parent=1 // pred_check_branch
      %60 = sbr.rel (0) target = $region33
    $region32: #{tpu_custom_call.1} parent=1 // pred_region
      %61 = dma.done [#allocation7], 256
    $region33: #{tpu_custom_call.1} parent=1 // pred_fallthru
      _
    // Predicated region
    $region34: #{tpu_custom_call.1} parent=1 // pred_check
      _
    $region35: #{tpu_custom_call.1} parent=1 // pred_check_branch
      %63 = sbr.rel (0) target = $region37
    $region36: #{tpu_custom_call.1} parent=1 // pred_region
      %64 = dma.done [#allocation7], 512
    $region37: #{tpu_custom_call.1} parent=1 // pred_fallthru
      _
    %v65 = vld [vmem:[#allocation3] sm:$0xff]
    %v66 = vld [vmem:[#allocation3 + $0x8] sm:$0xff]
    %v67 = vld [vmem:[%s2] sm:$0xff]
    %v68 = vld [vmem:[%s2 + $0x8] sm:$0xff]
    %v69 = vld [vmem:[%s2 + $0x10] sm:$0xff]
    %v70 = vld [vmem:[%s2 + $0x18] sm:$0xff]
    %v71 = vld [vmem:[%s2 + $0x20] sm:$0xff]
    %v72 = vld [vmem:[%s2 + $0x28] sm:$0xff]
    %v73 = vld [vmem:[%s2 + $0x30] sm:$0xff]
    %v74 = vld [vmem:[%s2 + $0x38] sm:$0xff]
    %v75 = vld [vmem:[%s2 + $0x40] sm:$0xff]
    %v76 = vld [vmem:[%s2 + $0x48] sm:$0xff]
    %v77 = vld [vmem:[%s2 + $0x50] sm:$0xff]
    %v78 = vld [vmem:[%s2 + $0x58] sm:$0xff]
    %vm79 = vcmask 785408
    %v81 = vsel %vm79, %v65, 0
    %v84 = vsel %vm79, %v66, 0
    %86 = vmatprep.subr.mxu0 0.0
    %87 = vmatpush1.msra.mxu0 0.0
    %88 = vmatprep.subr.mxu0 0.0
    %89 = vmatpush1.msra.mxu0 0.0
    %90 = vmatprep.subr.mxu0 0.0
    %91 = vmatpush1.msra.mxu0 0.0
    %92 = vmatprep.subr.mxu0 0.0
    %93 = vmatpush1.msra.mxu0 0.0
    %94 = vmatprep.subr.mxu0 0.0
    %95 = vmatpush1.msra.mxu0 %v78
    %96 = vmatprep.subr.mxu0 0.0
    %97 = vmatpush1.msra.mxu0 %v77
    %98 = vmatprep.subr.mxu0 0.0
    %99 = vmatpush1.msra.mxu0 %v76
    %100 = vmatprep.subr.mxu0 0.0
    %101 = vmatpush1.msra.mxu0 %v75
    %102 = vmatprep.subr.mxu0 0.0
    %103 = vmatpush1.msra.mxu0 %v74
    %104 = vmatprep.subr.mxu0 0.0
    %105 = vmatpush1.msra.mxu0 %v73
    %106 = vmatprep.subr.mxu0 0.0
    %107 = vmatpush1.msra.mxu0 %v72
    %108 = vmatprep.subr.mxu0 0.0
    %109 = vmatpush1.msra.mxu0 %v71
    %110 = vmatprep.subr.mxu0 0.0
    %111 = vmatpush1.msra.mxu0 %v70
    %112 = vmatprep.subr.mxu0 0.0
    %113 = vmatpush1.msra.mxu0 %v69
    %114 = vmatprep.subr.mxu0 0.0
    %115 = vmatpush1.msra.mxu0 %v68
    %116 = vmatprep.subr.mxu0 0.0
    %117 = vmatpush1.msra.mxu0 %v67
    %118 = vmatprep.subr.mxu0 0.0
    %119 = vmatpush2.msra.mxu0 0.0
    %120 = vmatprep.subr.mxu0 0.0
    %121 = vmatpush2.msra.mxu0 0.0
    %122 = vmatprep.subr.mxu0 0.0
    %123 = vmatpush2.msra.mxu0 0.0
    %124 = vmatprep.subr.mxu0 0.0
    %125 = vmatpush2.msra.mxu0 0.0
    %126 = vmatprep.subr.mxu0 0.0
    %127 = vmatpush2.msra.mxu0 0.0
    %128 = vmatprep.subr.mxu0 0.0
    %129 = vmatpush2.msra.mxu0 0.0
    %130 = vmatprep.subr.mxu0 0.0
    %131 = vmatpush2.msra.mxu0 0.0
    %132 = vmatprep.subr.mxu0 0.0
    %133 = vmatpush2.msra.mxu0 0.0
    %134 = vmatprep.subr.mxu0 0.0
    %135 = vmatpush2.msra.mxu0 0.0
    %136 = vmatprep.subr.mxu0 0.0
    %137 = vmatpush2.msra.mxu0 0.0
    %138 = vmatprep.subr.mxu0 0.0
    %139 = vmatpush2.msra.mxu0 0.0
    %140 = vmatprep.subr.mxu0 0.0
    %141 = vmatpush2.msra.mxu0 0.0
    %142 = vmatprep.subr.mxu0 0.0
    %143 = vmatpush2.msra.mxu0 0.0
    %144 = vmatprep.subr.mxu0 0.0
    %145 = vmatpush2.msra.mxu0 0.0
    %146 = vmatprep.subr.mxu0 0.0
    %147 = vmatpush2.msra.mxu0 0.0
    %148 = vmatprep.subr.mxu0 0.0
    %149 = vmatpush2.msra.mxu0 0.0
    %150 = vmatprep.mubr.f32.mxu0 0.0
    %151 = vmatmul.mubr.f32.gmra.mxu0 %v81
    %v152 = vpop.f32.mrf.mxu0
    %v153 = vadd.f32 0.0, %v152
    %v154 = vpop.f32.mrf.mxu0
    %155 = vmatprep.mubr.f32.mxu0 0.0
    %156 = vmatmul.mubr.f32.gmra.mxu0 %v84
    %v157 = vpop.f32.mrf.mxu0
    %v158 = vadd.f32 0.0, %v157
    %v159 = vpop.f32.mrf.mxu0
    %160 = vdwg.mxu0
    %162 = vrot.lane.b32.xlu0 %v153, 120
    %v163 = vpop.permute.xlu0 %162
    %165 = vrot.lane.b32.xlu0 %v153, 112
    %v166 = vpop.permute.xlu0 %165
    %168 = vrot.lane.b32.xlu0 %v153, 104
    %v169 = vpop.permute.xlu0 %168
    %172 = vrot.lane.b32.xlu0 %v158, 120
    %v173 = vpop.permute.xlu0 %172
    %175 = vrot.lane.b32.xlu0 %v158, 112
    %v176 = vpop.permute.xlu0 %175
    %178 = vrot.lane.b32.xlu0 %v158, 104
    %v179 = vpop.permute.xlu0 %178
    %181 = vrot.lane.b32.xlu0 %v153, 64
    %v182 = vpop.permute.xlu0 %181
    %183 = vrot.lane.b32.xlu0 %v153, 96
    %v184 = vpop.permute.xlu0 %183
    %vm185 = vcmask 64512
    %v186 = vsel %vm185, %v182, 0
    %v188 = vsel %vm185, %v184, 0
    %190 = vmatprep.subr.mxu0 0.0
    %191 = vmatpush1.xpose.msra.mxu0 0.0
    %192 = vmatprep.subr.mxu0 0.0
    %193 = vmatpush1.xpose.msra.mxu0 0.0
    %194 = vmatprep.subr.mxu0 0.0
    %195 = vmatpush1.xpose.msra.mxu0 0.0
    %196 = vmatprep.subr.mxu0 0.0
    %197 = vmatpush1.xpose.msra.mxu0 0.0
    %198 = vmatprep.subr.mxu0 0.0
    %199 = vmatpush1.xpose.msra.mxu0 0.0
    %200 = vmatprep.subr.mxu0 0.0
    %201 = vmatpush1.xpose.msra.mxu0 0.0
    %202 = vmatprep.subr.mxu0 0.0
    %203 = vmatpush1.xpose.msra.mxu0 0.0
    %204 = vmatprep.subr.mxu0 0.0
    %205 = vmatpush1.xpose.msra.mxu0 0.0
    %206 = vmatprep.subr.mxu0 0.0
    %207 = vmatpush1.xpose.msra.mxu0 0.0
    %208 = vmatprep.subr.mxu0 0.0
    %209 = vmatpush1.xpose.msra.mxu0 0.0
    %210 = vmatprep.subr.mxu0 0.0
    %211 = vmatpush1.xpose.msra.mxu0 0.0
    %212 = vmatprep.subr.mxu0 0.0
    %213 = vmatpush1.xpose.msra.mxu0 0.0
    %214 = vmatprep.subr.mxu0 0.0
    %215 = vmatpush1.xpose.msra.mxu0 0.0
    %216 = vmatprep.subr.mxu0 0.0
    %217 = vmatpush1.xpose.msra.mxu0 0.0
    %218 = vmatprep.subr.mxu0 0.0
    %219 = vmatpush1.xpose.msra.mxu0 0.0
    %220 = vmatprep.subr.mxu0 0.0
    %221 = vmatpush1.xpose.msra.mxu0 %v188
    %222 = vmatprep.subr.mxu0 0.0
    %223 = vmatpush2.xpose.msra.mxu0 0.0
    %224 = vmatprep.subr.mxu0 0.0
    %225 = vmatpush2.xpose.msra.mxu0 0.0
    %226 = vmatprep.subr.mxu0 0.0
    %227 = vmatpush2.xpose.msra.mxu0 0.0
    %228 = vmatprep.subr.mxu0 0.0
    %229 = vmatpush2.xpose.msra.mxu0 0.0
    %230 = vmatprep.subr.mxu0 0.0
    %231 = vmatpush2.xpose.msra.mxu0 0.0
    %232 = vmatprep.subr.mxu0 0.0
    %233 = vmatpush2.xpose.msra.mxu0 0.0
    %234 = vmatprep.subr.mxu0 0.0
    %235 = vmatpush2.xpose.msra.mxu0 0.0
    %236 = vmatprep.subr.mxu0 0.0
    %237 = vmatpush2.xpose.msra.mxu0 0.0
    %238 = vmatprep.subr.mxu0 0.0
    %239 = vmatpush2.xpose.msra.mxu0 0.0
    %240 = vmatprep.subr.mxu0 0.0
    %241 = vmatpush2.xpose.msra.mxu0 0.0
    %242 = vmatprep.subr.mxu0 0.0
    %243 = vmatpush2.xpose.msra.mxu0 0.0
    %244 = vmatprep.subr.mxu0 0.0
    %245 = vmatpush2.xpose.msra.mxu0 0.0
    %246 = vmatprep.subr.mxu0 0.0
    %247 = vmatpush2.xpose.msra.mxu0 0.0
    %248 = vmatprep.subr.mxu0 0.0
    %249 = vmatpush2.xpose.msra.mxu0 0.0
    %250 = vmatprep.subr.mxu0 0.0
    %251 = vmatpush2.xpose.msra.mxu0 0.0
    %252 = vmatprep.subr.mxu0 0.0
    %253 = vmatpush2.xpose.msra.mxu0 0.0
    %254 = vmatprep.mubr.f32.mxu0 0.0
    %255 = vmatmul.mubr.f32.gmra.mxu0 %v186
    %v256 = vpop.f32.mrf.mxu0
    %v257 = vadd.f32 0.0, %v256
    %v258 = vpop.f32.mrf.mxu0
    %259 = vdwg.mxu0
    %260 = vrot.lane.b32.xlu0 %v163, 64
    %v261 = vpop.permute.xlu0 %260
    %262 = vrot.lane.b32.xlu0 %v163, 96
    %v263 = vpop.permute.xlu0 %262
    %v264 = vsel %vm185, %v261, 0
    %v266 = vsel %vm185, %v263, 0
    %268 = vmatprep.subr.mxu0 0.0
    %269 = vmatpush1.xpose.msra.mxu0 0.0
    %270 = vmatprep.subr.mxu0 0.0
    %271 = vmatpush1.xpose.msra.mxu0 0.0
    %272 = vmatprep.subr.mxu0 0.0
    %273 = vmatpush1.xpose.msra.mxu0 0.0
    %274 = vmatprep.subr.mxu0 0.0
    %275 = vmatpush1.xpose.msra.mxu0 0.0
    %276 = vmatprep.subr.mxu0 0.0
    %277 = vmatpush1.xpose.msra.mxu0 0.0
    %278 = vmatprep.subr.mxu0 0.0
    %279 = vmatpush1.xpose.msra.mxu0 0.0
    %280 = vmatprep.subr.mxu0 0.0
    %281 = vmatpush1.xpose.msra.mxu0 0.0
    %282 = vmatprep.subr.mxu0 0.0
    %283 = vmatpush1.xpose.msra.mxu0 0.0
    %284 = vmatprep.subr.mxu0 0.0
    %285 = vmatpush1.xpose.msra.mxu0 0.0
    %286 = vmatprep.subr.mxu0 0.0
    %287 = vmatpush1.xpose.msra.mxu0 0.0
    %288 = vmatprep.subr.mxu0 0.0
    %289 = vmatpush1.xpose.msra.mxu0 0.0
    %290 = vmatprep.subr.mxu0 0.0
    %291 = vmatpush1.xpose.msra.mxu0 0.0
    %292 = vmatprep.subr.mxu0 0.0
    %293 = vmatpush1.xpose.msra.mxu0 0.0
    %294 = vmatprep.subr.mxu0 0.0
    %295 = vmatpush1.xpose.msra.mxu0 0.0
    %296 = vmatprep.subr.mxu0 0.0
    %297 = vmatpush1.xpose.msra.mxu0 0.0
    %298 = vmatprep.subr.mxu0 0.0
    %299 = vmatpush1.xpose.msra.mxu0 %v266
    %300 = vmatprep.subr.mxu0 0.0
    %301 = vmatpush2.xpose.msra.mxu0 0.0
    %302 = vmatprep.subr.mxu0 0.0
    %303 = vmatpush2.xpose.msra.mxu0 0.0
    %304 = vmatprep.subr.mxu0 0.0
    %305 = vmatpush2.xpose.msra.mxu0 0.0
    %306 = vmatprep.subr.mxu0 0.0
    %307 = vmatpush2.xpose.msra.mxu0 0.0
    %308 = vmatprep.subr.mxu0 0.0
    %309 = vmatpush2.xpose.msra.mxu0 0.0
    %310 = vmatprep.subr.mxu0 0.0
    %311 = vmatpush2.xpose.msra.mxu0 0.0
    %312 = vmatprep.subr.mxu0 0.0
    %313 = vmatpush2.xpose.msra.mxu0 0.0
    %314 = vmatprep.subr.mxu0 0.0
    %315 = vmatpush2.xpose.msra.mxu0 0.0
    %316 = vmatprep.subr.mxu0 0.0
    %317 = vmatpush2.xpose.msra.mxu0 0.0
    %318 = vmatprep.subr.mxu0 0.0
    %319 = vmatpush2.xpose.msra.mxu0 0.0
    %320 = vmatprep.subr.mxu0 0.0
    %321 = vmatpush2.xpose.msra.mxu0 0.0
    %322 = vmatprep.subr.mxu0 0.0
    %323 = vmatpush2.xpose.msra.mxu0 0.0
    %324 = vmatprep.subr.mxu0 0.0
    %325 = vmatpush2.xpose.msra.mxu0 0.0
    %326 = vmatprep.subr.mxu0 0.0
    %327 = vmatpush2.xpose.msra.mxu0 0.0
    %328 = vmatprep.subr.mxu0 0.0
    %329 = vmatpush2.xpose.msra.mxu0 0.0
    %330 = vmatprep.subr.mxu0 0.0
    %331 = vmatpush2.xpose.msra.mxu0 0.0
    %332 = vmatprep.mubr.f32.mxu0 0.0
    %333 = vmatmul.mubr.f32.gmra.mxu0 %v264
    %v334 = vpop.f32.mrf.mxu0
    %v335 = vadd.f32 0.0, %v334
    %v336 = vpop.f32.mrf.mxu0
    %337 = vdwg.mxu0
    %338 = vrot.lane.b32.xlu0 %v166, 64
    %v339 = vpop.permute.xlu0 %338
    %340 = vrot.lane.b32.xlu0 %v166, 96
    %v341 = vpop.permute.xlu0 %340
    %v342 = vsel %vm185, %v339, 0
    %v344 = vsel %vm185, %v341, 0
    %346 = vmatprep.subr.mxu0 0.0
    %347 = vmatpush1.xpose.msra.mxu0 0.0
    %348 = vmatprep.subr.mxu0 0.0
    %349 = vmatpush1.xpose.msra.mxu0 0.0
    %350 = vmatprep.subr.mxu0 0.0
    %351 = vmatpush1.xpose.msra.mxu0 0.0
    %352 = vmatprep.subr.mxu0 0.0
    %353 = vmatpush1.xpose.msra.mxu0 0.0
    %354 = vmatprep.subr.mxu0 0.0
    %355 = vmatpush1.xpose.msra.mxu0 0.0
    %356 = vmatprep.subr.mxu0 0.0
    %357 = vmatpush1.xpose.msra.mxu0 0.0
    %358 = vmatprep.subr.mxu0 0.0
    %359 = vmatpush1.xpose.msra.mxu0 0.0
    %360 = vmatprep.subr.mxu0 0.0
    %361 = vmatpush1.xpose.msra.mxu0 0.0
    %362 = vmatprep.subr.mxu0 0.0
    %363 = vmatpush1.xpose.msra.mxu0 0.0
    %364 = vmatprep.subr.mxu0 0.0
    %365 = vmatpush1.xpose.msra.mxu0 0.0
    %366 = vmatprep.subr.mxu0 0.0
    %367 = vmatpush1.xpose.msra.mxu0 0.0
    %368 = vmatprep.subr.mxu0 0.0
    %369 = vmatpush1.xpose.msra.mxu0 0.0
    %370 = vmatprep.subr.mxu0 0.0
    %371 = vmatpush1.xpose.msra.mxu0 0.0
    %372 = vmatprep.subr.mxu0 0.0
    %373 = vmatpush1.xpose.msra.mxu0 0.0
    %374 = vmatprep.subr.mxu0 0.0
    %375 = vmatpush1.xpose.msra.mxu0 0.0
    %376 = vmatprep.subr.mxu0 0.0
    %377 = vmatpush1.xpose.msra.mxu0 %v344
    %378 = vmatprep.subr.mxu0 0.0
    %379 = vmatpush2.xpose.msra.mxu0 0.0
    %380 = vmatprep.subr.mxu0 0.0
    %381 = vmatpush2.xpose.msra.mxu0 0.0
    %382 = vmatprep.subr.mxu0 0.0
    %383 = vmatpush2.xpose.msra.mxu0 0.0
    %384 = vmatprep.subr.mxu0 0.0
    %385 = vmatpush2.xpose.msra.mxu0 0.0
    %386 = vmatprep.subr.mxu0 0.0
    %387 = vmatpush2.xpose.msra.mxu0 0.0
    %388 = vmatprep.subr.mxu0 0.0
    %389 = vmatpush2.xpose.msra.mxu0 0.0
    %390 = vmatprep.subr.mxu0 0.0
    %391 = vmatpush2.xpose.msra.mxu0 0.0
    %392 = vmatprep.subr.mxu0 0.0
    %393 = vmatpush2.xpose.msra.mxu0 0.0
    %394 = vmatprep.subr.mxu0 0.0
    %395 = vmatpush2.xpose.msra.mxu0 0.0
    %396 = vmatprep.subr.mxu0 0.0
    %397 = vmatpush2.xpose.msra.mxu0 0.0
    %398 = vmatprep.subr.mxu0 0.0
    %399 = vmatpush2.xpose.msra.mxu0 0.0
    %400 = vmatprep.subr.mxu0 0.0
    %401 = vmatpush2.xpose.msra.mxu0 0.0
    %402 = vmatprep.subr.mxu0 0.0
    %403 = vmatpush2.xpose.msra.mxu0 0.0
    %404 = vmatprep.subr.mxu0 0.0
    %405 = vmatpush2.xpose.msra.mxu0 0.0
    %406 = vmatprep.subr.mxu0 0.0
    %407 = vmatpush2.xpose.msra.mxu0 0.0
    %408 = vmatprep.subr.mxu0 0.0
    %409 = vmatpush2.xpose.msra.mxu0 0.0
    %410 = vmatprep.mubr.f32.mxu0 0.0
    %411 = vmatmul.mubr.f32.gmra.mxu0 %v342
    %v412 = vpop.f32.mrf.mxu0
    %v413 = vadd.f32 0.0, %v412
    %v414 = vpop.f32.mrf.mxu0
    %415 = vdwg.mxu0
    %416 = vrot.lane.b32.xlu0 %v169, 64
    %v417 = vpop.permute.xlu0 %416
    %418 = vrot.lane.b32.xlu0 %v169, 96
    %v419 = vpop.permute.xlu0 %418
    %v420 = vsel %vm185, %v417, 0
    %v422 = vsel %vm185, %v419, 0
    %424 = vmatprep.subr.mxu0 0.0
    %425 = vmatpush1.xpose.msra.mxu0 0.0
    %426 = vmatprep.subr.mxu0 0.0
    %427 = vmatpush1.xpose.msra.mxu0 0.0
    %428 = vmatprep.subr.mxu0 0.0
    %429 = vmatpush1.xpose.msra.mxu0 0.0
    %430 = vmatprep.subr.mxu0 0.0
    %431 = vmatpush1.xpose.msra.mxu0 0.0
    %432 = vmatprep.subr.mxu0 0.0
    %433 = vmatpush1.xpose.msra.mxu0 0.0
    %434 = vmatprep.subr.mxu0 0.0
    %435 = vmatpush1.xpose.msra.mxu0 0.0
    %436 = vmatprep.subr.mxu0 0.0
    %437 = vmatpush1.xpose.msra.mxu0 0.0
    %438 = vmatprep.subr.mxu0 0.0
    %439 = vmatpush1.xpose.msra.mxu0 0.0
    %440 = vmatprep.subr.mxu0 0.0
    %441 = vmatpush1.xpose.msra.mxu0 0.0
    %442 = vmatprep.subr.mxu0 0.0
    %443 = vmatpush1.xpose.msra.mxu0 0.0
    %444 = vmatprep.subr.mxu0 0.0
    %445 = vmatpush1.xpose.msra.mxu0 0.0
    %446 = vmatprep.subr.mxu0 0.0
    %447 = vmatpush1.xpose.msra.mxu0 0.0
    %448 = vmatprep.subr.mxu0 0.0
    %449 = vmatpush1.xpose.msra.mxu0 0.0
    %450 = vmatprep.subr.mxu0 0.0
    %451 = vmatpush1.xpose.msra.mxu0 0.0
    %452 = vmatprep.subr.mxu0 0.0
    %453 = vmatpush1.xpose.msra.mxu0 0.0
    %454 = vmatprep.subr.mxu0 0.0
    %455 = vmatpush1.xpose.msra.mxu0 %v422
    %456 = vmatprep.subr.mxu0 0.0
    %457 = vmatpush2.xpose.msra.mxu0 0.0
    %458 = vmatprep.subr.mxu0 0.0
    %459 = vmatpush2.xpose.msra.mxu0 0.0
    %460 = vmatprep.subr.mxu0 0.0
    %461 = vmatpush2.xpose.msra.mxu0 0.0
    %462 = vmatprep.subr.mxu0 0.0
    %463 = vmatpush2.xpose.msra.mxu0 0.0
    %464 = vmatprep.subr.mxu0 0.0
    %465 = vmatpush2.xpose.msra.mxu0 0.0
    %466 = vmatprep.subr.mxu0 0.0
    %467 = vmatpush2.xpose.msra.mxu0 0.0
    %468 = vmatprep.subr.mxu0 0.0
    %469 = vmatpush2.xpose.msra.mxu0 0.0
    %470 = vmatprep.subr.mxu0 0.0
    %471 = vmatpush2.xpose.msra.mxu0 0.0
    %472 = vmatprep.subr.mxu0 0.0
    %473 = vmatpush2.xpose.msra.mxu0 0.0
    %474 = vmatprep.subr.mxu0 0.0
    %475 = vmatpush2.xpose.msra.mxu0 0.0
    %476 = vmatprep.subr.mxu0 0.0
    %477 = vmatpush2.xpose.msra.mxu0 0.0
    %478 = vmatprep.subr.mxu0 0.0
    %479 = vmatpush2.xpose.msra.mxu0 0.0
    %480 = vmatprep.subr.mxu0 0.0
    %481 = vmatpush2.xpose.msra.mxu0 0.0
    %482 = vmatprep.subr.mxu0 0.0
    %483 = vmatpush2.xpose.msra.mxu0 0.0
    %484 = vmatprep.subr.mxu0 0.0
    %485 = vmatpush2.xpose.msra.mxu0 0.0
    %486 = vmatprep.subr.mxu0 0.0
    %487 = vmatpush2.xpose.msra.mxu0 0.0
    %488 = vmatprep.mubr.f32.mxu0 0.0
    %489 = vmatmul.mubr.f32.gmra.mxu0 %v420
    %v490 = vpop.f32.mrf.mxu0
    %v491 = vadd.f32 0.0, %v490
    %v492 = vpop.f32.mrf.mxu0
    %493 = vdwg.mxu0
    %494 = vrot.lane.b32.xlu0 %v158, 64
    %v495 = vpop.permute.xlu0 %494
    %496 = vrot.lane.b32.xlu0 %v158, 96
    %v497 = vpop.permute.xlu0 %496
    %v498 = vsel %vm185, %v495, 0
    %v500 = vsel %vm185, %v497, 0
    %502 = vmatprep.subr.mxu0 0.0
    %503 = vmatpush1.xpose.msra.mxu0 0.0
    %504 = vmatprep.subr.mxu0 0.0
    %505 = vmatpush1.xpose.msra.mxu0 0.0
    %506 = vmatprep.subr.mxu0 0.0
    %507 = vmatpush1.xpose.msra.mxu0 0.0
    %508 = vmatprep.subr.mxu0 0.0
    %509 = vmatpush1.xpose.msra.mxu0 0.0
    %510 = vmatprep.subr.mxu0 0.0
    %511 = vmatpush1.xpose.msra.mxu0 0.0
    %512 = vmatprep.subr.mxu0 0.0
    %513 = vmatpush1.xpose.msra.mxu0 0.0
    %514 = vmatprep.subr.mxu0 0.0
    %515 = vmatpush1.xpose.msra.mxu0 0.0
    %516 = vmatprep.subr.mxu0 0.0
    %517 = vmatpush1.xpose.msra.mxu0 0.0
    %518 = vmatprep.subr.mxu0 0.0
    %519 = vmatpush1.xpose.msra.mxu0 0.0
    %520 = vmatprep.subr.mxu0 0.0
    %521 = vmatpush1.xpose.msra.mxu0 0.0
    %522 = vmatprep.subr.mxu0 0.0
    %523 = vmatpush1.xpose.msra.mxu0 0.0
    %524 = vmatprep.subr.mxu0 0.0
    %525 = vmatpush1.xpose.msra.mxu0 0.0
    %526 = vmatprep.subr.mxu0 0.0
    %527 = vmatpush1.xpose.msra.mxu0 0.0
    %528 = vmatprep.subr.mxu0 0.0
    %529 = vmatpush1.xpose.msra.mxu0 0.0
    %530 = vmatprep.subr.mxu0 0.0
    %531 = vmatpush1.xpose.msra.mxu0 0.0
    %532 = vmatprep.subr.mxu0 0.0
    %533 = vmatpush1.xpose.msra.mxu0 %v500
    %534 = vmatprep.subr.mxu0 0.0
    %535 = vmatpush2.xpose.msra.mxu0 0.0
    %536 = vmatprep.subr.mxu0 0.0
    %537 = vmatpush2.xpose.msra.mxu0 0.0
    %538 = vmatprep.subr.mxu0 0.0
    %539 = vmatpush2.xpose.msra.mxu0 0.0
    %540 = vmatprep.subr.mxu0 0.0
    %541 = vmatpush2.xpose.msra.mxu0 0.0
    %542 = vmatprep.subr.mxu0 0.0
    %543 = vmatpush2.xpose.msra.mxu0 0.0
    %544 = vmatprep.subr.mxu0 0.0
    %545 = vmatpush2.xpose.msra.mxu0 0.0
    %546 = vmatprep.subr.mxu0 0.0
    %547 = vmatpush2.xpose.msra.mxu0 0.0
    %548 = vmatprep.subr.mxu0 0.0
    %549 = vmatpush2.xpose.msra.mxu0 0.0
    %550 = vmatprep.subr.mxu0 0.0
    %551 = vmatpush2.xpose.msra.mxu0 0.0
    %552 = vmatprep.subr.mxu0 0.0
    %553 = vmatpush2.xpose.msra.mxu0 0.0
    %554 = vmatprep.subr.mxu0 0.0
    %555 = vmatpush2.xpose.msra.mxu0 0.0
    %556 = vmatprep.subr.mxu0 0.0
    %557 = vmatpush2.xpose.msra.mxu0 0.0
    %558 = vmatprep.subr.mxu0 0.0
    %559 = vmatpush2.xpose.msra.mxu0 0.0
    %560 = vmatprep.subr.mxu0 0.0
    %561 = vmatpush2.xpose.msra.mxu0 0.0
    %562 = vmatprep.subr.mxu0 0.0
    %563 = vmatpush2.xpose.msra.mxu0 0.0
    %564 = vmatprep.subr.mxu0 0.0
    %565 = vmatpush2.xpose.msra.mxu0 0.0
    %566 = vmatprep.mubr.f32.mxu0 0.0
    %567 = vmatmul.mubr.f32.gmra.mxu0 %v498
    %v568 = vpop.f32.mrf.mxu0
    %v569 = vadd.f32 0.0, %v568
    %v570 = vpop.f32.mrf.mxu0
    %571 = vdwg.mxu0
    %572 = vrot.lane.b32.xlu0 %v173, 64
    %v573 = vpop.permute.xlu0 %572
    %574 = vrot.lane.b32.xlu0 %v173, 96
    %v575 = vpop.permute.xlu0 %574
    %v576 = vsel %vm185, %v573, 0
    %v578 = vsel %vm185, %v575, 0
    %580 = vmatprep.subr.mxu0 0.0
    %581 = vmatpush1.xpose.msra.mxu0 0.0
    %582 = vmatprep.subr.mxu0 0.0
    %583 = vmatpush1.xpose.msra.mxu0 0.0
    %584 = vmatprep.subr.mxu0 0.0
    %585 = vmatpush1.xpose.msra.mxu0 0.0
    %586 = vmatprep.subr.mxu0 0.0
    %587 = vmatpush1.xpose.msra.mxu0 0.0
    %588 = vmatprep.subr.mxu0 0.0
    %589 = vmatpush1.xpose.msra.mxu0 0.0
    %590 = vmatprep.subr.mxu0 0.0
    %591 = vmatpush1.xpose.msra.mxu0 0.0
    %592 = vmatprep.subr.mxu0 0.0
    %593 = vmatpush1.xpose.msra.mxu0 0.0
    %594 = vmatprep.subr.mxu0 0.0
    %595 = vmatpush1.xpose.msra.mxu0 0.0
    %596 = vmatprep.subr.mxu0 0.0
    %597 = vmatpush1.xpose.msra.mxu0 0.0
    %598 = vmatprep.subr.mxu0 0.0
    %599 = vmatpush1.xpose.msra.mxu0 0.0
    %600 = vmatprep.subr.mxu0 0.0
    %601 = vmatpush1.xpose.msra.mxu0 0.0
    %602 = vmatprep.subr.mxu0 0.0
    %603 = vmatpush1.xpose.msra.mxu0 0.0
    %604 = vmatprep.subr.mxu0 0.0
    %605 = vmatpush1.xpose.msra.mxu0 0.0
    %606 = vmatprep.subr.mxu0 0.0
    %607 = vmatpush1.xpose.msra.mxu0 0.0
    %608 = vmatprep.subr.mxu0 0.0
    %609 = vmatpush1.xpose.msra.mxu0 0.0
    %610 = vmatprep.subr.mxu0 0.0
    %611 = vmatpush1.xpose.msra.mxu0 %v578
    %612 = vmatprep.subr.mxu0 0.0
    %613 = vmatpush2.xpose.msra.mxu0 0.0
    %614 = vmatprep.subr.mxu0 0.0
    %615 = vmatpush2.xpose.msra.mxu0 0.0
    %616 = vmatprep.subr.mxu0 0.0
    %617 = vmatpush2.xpose.msra.mxu0 0.0
    %618 = vmatprep.subr.mxu0 0.0
    %619 = vmatpush2.xpose.msra.mxu0 0.0
    %620 = vmatprep.subr.mxu0 0.0
    %621 = vmatpush2.xpose.msra.mxu0 0.0
    %622 = vmatprep.subr.mxu0 0.0
    %623 = vmatpush2.xpose.msra.mxu0 0.0
    %624 = vmatprep.subr.mxu0 0.0
    %625 = vmatpush2.xpose.msra.mxu0 0.0
    %626 = vmatprep.subr.mxu0 0.0
    %627 = vmatpush2.xpose.msra.mxu0 0.0
    %628 = vmatprep.subr.mxu0 0.0
    %629 = vmatpush2.xpose.msra.mxu0 0.0
    %630 = vmatprep.subr.mxu0 0.0
    %631 = vmatpush2.xpose.msra.mxu0 0.0
    %632 = vmatprep.subr.mxu0 0.0
    %633 = vmatpush2.xpose.msra.mxu0 0.0
    %634 = vmatprep.subr.mxu0 0.0
    %635 = vmatpush2.xpose.msra.mxu0 0.0
    %636 = vmatprep.subr.mxu0 0.0
    %637 = vmatpush2.xpose.msra.mxu0 0.0
    %638 = vmatprep.subr.mxu0 0.0
    %639 = vmatpush2.xpose.msra.mxu0 0.0
    %640 = vmatprep.subr.mxu0 0.0
    %641 = vmatpush2.xpose.msra.mxu0 0.0
    %642 = vmatprep.subr.mxu0 0.0
    %643 = vmatpush2.xpose.msra.mxu0 0.0
    %644 = vmatprep.mubr.f32.mxu0 0.0
    %645 = vmatmul.mubr.f32.gmra.mxu0 %v576
    %v646 = vpop.f32.mrf.mxu0
    %v647 = vadd.f32 0.0, %v646
    %v648 = vpop.f32.mrf.mxu0
    %649 = vdwg.mxu0
    %650 = vrot.lane.b32.xlu0 %v176, 64
    %v651 = vpop.permute.xlu0 %650
    %652 = vrot.lane.b32.xlu0 %v176, 96
    %v653 = vpop.permute.xlu0 %652
    %v654 = vsel %vm185, %v651, 0
    %v656 = vsel %vm185, %v653, 0
    %658 = vmatprep.subr.mxu0 0.0
    %659 = vmatpush1.xpose.msra.mxu0 0.0
    %660 = vmatprep.subr.mxu0 0.0
    %661 = vmatpush1.xpose.msra.mxu0 0.0
    %662 = vmatprep.subr.mxu0 0.0
    %663 = vmatpush1.xpose.msra.mxu0 0.0
    %664 = vmatprep.subr.mxu0 0.0
    %665 = vmatpush1.xpose.msra.mxu0 0.0
    %666 = vmatprep.subr.mxu0 0.0
    %667 = vmatpush1.xpose.msra.mxu0 0.0
    %668 = vmatprep.subr.mxu0 0.0
    %669 = vmatpush1.xpose.msra.mxu0 0.0
    %670 = vmatprep.subr.mxu0 0.0
    %671 = vmatpush1.xpose.msra.mxu0 0.0
    %672 = vmatprep.subr.mxu0 0.0
    %673 = vmatpush1.xpose.msra.mxu0 0.0
    %674 = vmatprep.subr.mxu0 0.0
    %675 = vmatpush1.xpose.msra.mxu0 0.0
    %676 = vmatprep.subr.mxu0 0.0
    %677 = vmatpush1.xpose.msra.mxu0 0.0
    %678 = vmatprep.subr.mxu0 0.0
    %679 = vmatpush1.xpose.msra.mxu0 0.0
    %680 = vmatprep.subr.mxu0 0.0
    %681 = vmatpush1.xpose.msra.mxu0 0.0
    %682 = vmatprep.subr.mxu0 0.0
    %683 = vmatpush1.xpose.msra.mxu0 0.0
    %684 = vmatprep.subr.mxu0 0.0
    %685 = vmatpush1.xpose.msra.mxu0 0.0
    %686 = vmatprep.subr.mxu0 0.0
    %687 = vmatpush1.xpose.msra.mxu0 0.0
    %688 = vmatprep.subr.mxu0 0.0
    %689 = vmatpush1.xpose.msra.mxu0 %v656
    %690 = vmatprep.subr.mxu0 0.0
    %691 = vmatpush2.xpose.msra.mxu0 0.0
    %692 = vmatprep.subr.mxu0 0.0
    %693 = vmatpush2.xpose.msra.mxu0 0.0
    %694 = vmatprep.subr.mxu0 0.0
    %695 = vmatpush2.xpose.msra.mxu0 0.0
    %696 = vmatprep.subr.mxu0 0.0
    %697 = vmatpush2.xpose.msra.mxu0 0.0
    %698 = vmatprep.subr.mxu0 0.0
    %699 = vmatpush2.xpose.msra.mxu0 0.0
    %700 = vmatprep.subr.mxu0 0.0
    %701 = vmatpush2.xpose.msra.mxu0 0.0
    %702 = vmatprep.subr.mxu0 0.0
    %703 = vmatpush2.xpose.msra.mxu0 0.0
    %704 = vmatprep.subr.mxu0 0.0
    %705 = vmatpush2.xpose.msra.mxu0 0.0
    %706 = vmatprep.subr.mxu0 0.0
    %707 = vmatpush2.xpose.msra.mxu0 0.0
    %708 = vmatprep.subr.mxu0 0.0
    %709 = vmatpush2.xpose.msra.mxu0 0.0
    %710 = vmatprep.subr.mxu0 0.0
    %711 = vmatpush2.xpose.msra.mxu0 0.0
    %712 = vmatprep.subr.mxu0 0.0
    %713 = vmatpush2.xpose.msra.mxu0 0.0
    %714 = vmatprep.subr.mxu0 0.0
    %715 = vmatpush2.xpose.msra.mxu0 0.0
    %716 = vmatprep.subr.mxu0 0.0
    %717 = vmatpush2.xpose.msra.mxu0 0.0
    %718 = vmatprep.subr.mxu0 0.0
    %719 = vmatpush2.xpose.msra.mxu0 0.0
    %720 = vmatprep.subr.mxu0 0.0
    %721 = vmatpush2.xpose.msra.mxu0 0.0
    %722 = vmatprep.mubr.f32.mxu0 0.0
    %723 = vmatmul.mubr.f32.gmra.mxu0 %v654
    %v724 = vpop.f32.mrf.mxu0
    %v725 = vadd.f32 0.0, %v724
    %v726 = vpop.f32.mrf.mxu0
    %727 = vdwg.mxu0
    %728 = vrot.lane.b32.xlu0 %v179, 64
    %v729 = vpop.permute.xlu0 %728
    %730 = vrot.lane.b32.xlu0 %v179, 96
    %v731 = vpop.permute.xlu0 %730
    %v732 = vsel %vm185, %v729, 0
    %v734 = vsel %vm185, %v731, 0
    %736 = vmatprep.subr.mxu0 0.0
    %737 = vmatpush1.xpose.msra.mxu0 0.0
    %738 = vmatprep.subr.mxu0 0.0
    %739 = vmatpush1.xpose.msra.mxu0 0.0
    %740 = vmatprep.subr.mxu0 0.0
    %741 = vmatpush1.xpose.msra.mxu0 0.0
    %742 = vmatprep.subr.mxu0 0.0
    %743 = vmatpush1.xpose.msra.mxu0 0.0
    %744 = vmatprep.subr.mxu0 0.0
    %745 = vmatpush1.xpose.msra.mxu0 0.0
    %746 = vmatprep.subr.mxu0 0.0
    %747 = vmatpush1.xpose.msra.mxu0 0.0
    %748 = vmatprep.subr.mxu0 0.0
    %749 = vmatpush1.xpose.msra.mxu0 0.0
    %750 = vmatprep.subr.mxu0 0.0
    %751 = vmatpush1.xpose.msra.mxu0 0.0
    %752 = vmatprep.subr.mxu0 0.0
    %753 = vmatpush1.xpose.msra.mxu0 0.0
    %754 = vmatprep.subr.mxu0 0.0
    %755 = vmatpush1.xpose.msra.mxu0 0.0
    %756 = vmatprep.subr.mxu0 0.0
    %757 = vmatpush1.xpose.msra.mxu0 0.0
    %758 = vmatprep.subr.mxu0 0.0
    %759 = vmatpush1.xpose.msra.mxu0 0.0
    %760 = vmatprep.subr.mxu0 0.0
    %761 = vmatpush1.xpose.msra.mxu0 0.0
    %762 = vmatprep.subr.mxu0 0.0
    %763 = vmatpush1.xpose.msra.mxu0 0.0
    %764 = vmatprep.subr.mxu0 0.0
    %765 = vmatpush1.xpose.msra.mxu0 0.0
    %766 = vmatprep.subr.mxu0 0.0
    %767 = vmatpush1.xpose.msra.mxu0 %v734
    %768 = vmatprep.subr.mxu0 0.0
    %769 = vmatpush2.xpose.msra.mxu0 0.0
    %770 = vmatprep.subr.mxu0 0.0
    %771 = vmatpush2.xpose.msra.mxu0 0.0
    %772 = vmatprep.subr.mxu0 0.0
    %773 = vmatpush2.xpose.msra.mxu0 0.0
    %774 = vmatprep.subr.mxu0 0.0
    %775 = vmatpush2.xpose.msra.mxu0 0.0
    %776 = vmatprep.subr.mxu0 0.0
    %777 = vmatpush2.xpose.msra.mxu0 0.0
    %778 = vmatprep.subr.mxu0 0.0
    %779 = vmatpush2.xpose.msra.mxu0 0.0
    %780 = vmatprep.subr.mxu0 0.0
    %781 = vmatpush2.xpose.msra.mxu0 0.0
    %782 = vmatprep.subr.mxu0 0.0
    %783 = vmatpush2.xpose.msra.mxu0 0.0
    %784 = vmatprep.subr.mxu0 0.0
    %785 = vmatpush2.xpose.msra.mxu0 0.0
    %786 = vmatprep.subr.mxu0 0.0
    %787 = vmatpush2.xpose.msra.mxu0 0.0
    %788 = vmatprep.subr.mxu0 0.0
    %789 = vmatpush2.xpose.msra.mxu0 0.0
    %790 = vmatprep.subr.mxu0 0.0
    %791 = vmatpush2.xpose.msra.mxu0 0.0
    %792 = vmatprep.subr.mxu0 0.0
    %793 = vmatpush2.xpose.msra.mxu0 0.0
    %794 = vmatprep.subr.mxu0 0.0
    %795 = vmatpush2.xpose.msra.mxu0 0.0
    %796 = vmatprep.subr.mxu0 0.0
    %797 = vmatpush2.xpose.msra.mxu0 0.0
    %798 = vmatprep.subr.mxu0 0.0
    %799 = vmatpush2.xpose.msra.mxu0 0.0
    %800 = vmatprep.mubr.f32.mxu0 0.0
    %801 = vmatmul.mubr.f32.gmra.mxu0 %v732
    %v802 = vpop.f32.mrf.mxu0
    %v803 = vadd.f32 0.0, %v802
    %v804 = vpop.f32.mrf.mxu0
    %805 = vdwg.mxu0
    %v806 = vld [vmem:[#allocation6] sm:$0xff]
    %v807 = vld [vmem:[#allocation6 + $0x8] sm:$0xff]
    %vm808 = vcmp.eq.f32.partialorder %v806, 0.0
    %vm809 = vcmp.eq.f32.partialorder %v807, 0.0
    %v810 = vsel %vm808, -1e+20, %v257
    %v811 = vsel %vm808, -1e+20, %v335
    %v812 = vsel %vm808, -1e+20, %v413
    %v813 = vsel %vm808, -1e+20, %v491
    %v814 = vsel %vm809, -1e+20, %v569
    %v815 = vsel %vm809, -1e+20, %v647
    %v816 = vsel %vm809, -1e+20, %v725
    %v817 = vsel %vm809, -1e+20, %v803
    %v818 = vsel %vm185, %v810, -inf
    %819 = vmax.xlane.f32.xlu0 %v818
    %v820 = vpop.xlane.xlu0 %819
    %v821 = vsel %vm185, %v811, -inf
    %822 = vmax.xlane.f32.xlu0 %v821
    %v823 = vpop.xlane.xlu0 %822
    %v824 = vsel %vm185, %v812, -inf
    %825 = vmax.xlane.f32.xlu0 %v824
    %v826 = vpop.xlane.xlu0 %825
    %v827 = vsel %vm185, %v813, -inf
    %828 = vmax.xlane.f32.xlu0 %v827
    %v829 = vpop.xlane.xlu0 %828
    %v830 = vsel %vm185, %v814, -inf
    %831 = vmax.xlane.f32.xlu0 %v830
    %v832 = vpop.xlane.xlu0 %831
    %v833 = vsel %vm185, %v815, -inf
    %834 = vmax.xlane.f32.xlu0 %v833
    %v835 = vpop.xlane.xlu0 %834
    %v836 = vsel %vm185, %v816, -inf
    %837 = vmax.xlane.f32.xlu0 %v836
    %v838 = vpop.xlane.xlu0 %837
    %v839 = vsel %vm185, %v817, -inf
    %840 = vmax.xlane.f32.xlu0 %v839
    %v841 = vpop.xlane.xlu0 %840
    %v842 = vsub.f32 %v810, %v820
    %v843 = vsub.f32 %v811, %v823
    %v844 = vsub.f32 %v812, %v826
    %v845 = vsub.f32 %v813, %v829
    %v846 = vsub.f32 %v814, %v832
    %v847 = vsub.f32 %v815, %v835
    %v848 = vsub.f32 %v816, %v838
    %v849 = vsub.f32 %v817, %v841
    %v850 = vmul.f32 %v842, 1.442695
    %v851 = vpow.pop %v850
    %v852 = vmul.f32 %v843, 1.442695
    %v853 = vpow.pop %v852
    %v854 = vmul.f32 %v844, 1.442695
    %v855 = vpow.pop %v854
    %v856 = vmul.f32 %v845, 1.442695
    %v857 = vpow.pop %v856
    %v858 = vmul.f32 %v846, 1.442695
    %v859 = vpow.pop %v858
    %v860 = vmul.f32 %v847, 1.442695
    %v861 = vpow.pop %v860
    %v862 = vmul.f32 %v848, 1.442695
    %v863 = vpow.pop %v862
    %v864 = vmul.f32 %v849, 1.442695
    %v865 = vpow.pop %v864
    %v866 = vsel %vm185, %v851, 0.0
    %867 = vadd.xlane.f32.xlu0 %v866
    %v868 = vpop.xlane.xlu0 %867
    %v869 = vsel %vm185, %v853, 0.0
    %870 = vadd.xlane.f32.xlu0 %v869
    %v871 = vpop.xlane.xlu0 %870
    %v872 = vsel %vm185, %v855, 0.0
    %873 = vadd.xlane.f32.xlu0 %v872
    %v874 = vpop.xlane.xlu0 %873
    %v875 = vsel %vm185, %v857, 0.0
    %876 = vadd.xlane.f32.xlu0 %v875
    %v877 = vpop.xlane.xlu0 %876
    %v878 = vsel %vm185, %v859, 0.0
    %879 = vadd.xlane.f32.xlu0 %v878
    %v880 = vpop.xlane.xlu0 %879
    %v881 = vsel %vm185, %v861, 0.0
    %882 = vadd.xlane.f32.xlu0 %v881
    %v883 = vpop.xlane.xlu0 %882
    %v884 = vsel %vm185, %v863, 0.0
    %885 = vadd.xlane.f32.xlu0 %v884
    %v886 = vpop.xlane.xlu0 %885
    %v887 = vsel %vm185, %v865, 0.0
    %888 = vadd.xlane.f32.xlu0 %v887
    %v889 = vpop.xlane.xlu0 %888
    %v890 = vrcp.pop %v868
    %v891 = vmul.f32 %v851, %v890
    %v892 = vrcp.pop %v871
    %v893 = vmul.f32 %v853, %v892
    %v894 = vrcp.pop %v874
    %v895 = vmul.f32 %v855, %v894
    %v896 = vrcp.pop %v877
    %v897 = vmul.f32 %v857, %v896
    %v898 = vrcp.pop %v880
    %v899 = vmul.f32 %v859, %v898
    %v900 = vrcp.pop %v883
    %v901 = vmul.f32 %v861, %v900
    %v902 = vrcp.pop %v886
    %v903 = vmul.f32 %v863, %v902
    %v904 = vrcp.pop %v889
    %v905 = vmul.f32 %v865, %v904
    %v907 = vsel %vm185, %v891, 0
    %909 = vmatprep.subr.mxu0 0.0
    %910 = vmatpush1.msra.mxu0 0.0
    %911 = vmatprep.subr.mxu0 0.0
    %912 = vmatpush1.msra.mxu0 0.0
    %913 = vmatprep.subr.mxu0 0.0
    %914 = vmatpush1.msra.mxu0 0.0
    %915 = vmatprep.subr.mxu0 0.0
    %916 = vmatpush1.msra.mxu0 0.0
    %917 = vmatprep.subr.mxu0 0.0
    %918 = vmatpush1.msra.mxu0 0.0
    %919 = vmatprep.subr.mxu0 0.0
    %920 = vmatpush1.msra.mxu0 0.0
    %921 = vmatprep.subr.mxu0 0.0
    %922 = vmatpush1.msra.mxu0 0.0
    %923 = vmatprep.subr.mxu0 0.0
    %924 = vmatpush1.msra.mxu0 0.0
    %925 = vmatprep.subr.mxu0 0.0
    %926 = vmatpush1.msra.mxu0 0.0
    %927 = vmatprep.subr.mxu0 0.0
    %928 = vmatpush1.msra.mxu0 0.0
    %929 = vmatprep.subr.mxu0 0.0
    %930 = vmatpush1.msra.mxu0 0.0
    %931 = vmatprep.subr.mxu0 0.0
    %932 = vmatpush1.msra.mxu0 0.0
    %933 = vmatprep.subr.mxu0 0.0
    %934 = vmatpush1.msra.mxu0 0.0
    %935 = vmatprep.subr.mxu0 0.0
    %936 = vmatpush1.msra.mxu0 0.0
    %937 = vmatprep.subr.mxu0 0.0
    %938 = vmatpush1.msra.mxu0 0.0
    %939 = vmatprep.subr.mxu0 0.0
    %940 = vmatpush1.msra.mxu0 %v153
    %941 = vmatprep.subr.mxu0 0.0
    %942 = vmatpush2.msra.mxu0 0.0
    %943 = vmatprep.subr.mxu0 0.0
    %944 = vmatpush2.msra.mxu0 0.0
    %945 = vmatprep.subr.mxu0 0.0
    %946 = vmatpush2.msra.mxu0 0.0
    %947 = vmatprep.subr.mxu0 0.0
    %948 = vmatpush2.msra.mxu0 0.0
    %949 = vmatprep.subr.mxu0 0.0
    %950 = vmatpush2.msra.mxu0 0.0
    %951 = vmatprep.subr.mxu0 0.0
    %952 = vmatpush2.msra.mxu0 0.0
    %953 = vmatprep.subr.mxu0 0.0
    %954 = vmatpush2.msra.mxu0 0.0
    %955 = vmatprep.subr.mxu0 0.0
    %956 = vmatpush2.msra.mxu0 0.0
    %957 = vmatprep.subr.mxu0 0.0
    %958 = vmatpush2.msra.mxu0 0.0
    %959 = vmatprep.subr.mxu0 0.0
    %960 = vmatpush2.msra.mxu0 0.0
    %961 = vmatprep.subr.mxu0 0.0
    %962 = vmatpush2.msra.mxu0 0.0
    %963 = vmatprep.subr.mxu0 0.0
    %964 = vmatpush2.msra.mxu0 0.0
    %965 = vmatprep.subr.mxu0 0.0
    %966 = vmatpush2.msra.mxu0 0.0
    %967 = vmatprep.subr.mxu0 0.0
    %968 = vmatpush2.msra.mxu0 0.0
    %969 = vmatprep.subr.mxu0 0.0
    %970 = vmatpush2.msra.mxu0 0.0
    %971 = vmatprep.subr.mxu0 0.0
    %972 = vmatpush2.msra.mxu0 0.0
    %973 = vmatprep.mubr.f32.mxu0 0.0
    %974 = vmatmul.mubr.f32.gmra.mxu0 %v907
    %v975 = vpop.f32.mrf.mxu0
    %v976 = vadd.f32 0.0, %v975
    %v977 = vpop.f32.mrf.mxu0
    %978 = vdwg.mxu0
    %v980 = vsel %vm185, %v893, 0
    %982 = vmatprep.subr.mxu0 0.0
    %983 = vmatpush1.msra.mxu0 0.0
    %984 = vmatprep.subr.mxu0 0.0
    %985 = vmatpush1.msra.mxu0 0.0
    %986 = vmatprep.subr.mxu0 0.0
    %987 = vmatpush1.msra.mxu0 0.0
    %988 = vmatprep.subr.mxu0 0.0
    %989 = vmatpush1.msra.mxu0 0.0
    %990 = vmatprep.subr.mxu0 0.0
    %991 = vmatpush1.msra.mxu0 0.0
    %992 = vmatprep.subr.mxu0 0.0
    %993 = vmatpush1.msra.mxu0 0.0
    %994 = vmatprep.subr.mxu0 0.0
    %995 = vmatpush1.msra.mxu0 0.0
    %996 = vmatprep.subr.mxu0 0.0
    %997 = vmatpush1.msra.mxu0 0.0
    %998 = vmatprep.subr.mxu0 0.0
    %999 = vmatpush1.msra.mxu0 0.0
    %1000 = vmatprep.subr.mxu0 0.0
    %1001 = vmatpush1.msra.mxu0 0.0
    %1002 = vmatprep.subr.mxu0 0.0
    %1003 = vmatpush1.msra.mxu0 0.0
    %1004 = vmatprep.subr.mxu0 0.0
    %1005 = vmatpush1.msra.mxu0 0.0
    %1006 = vmatprep.subr.mxu0 0.0
    %1007 = vmatpush1.msra.mxu0 0.0
    %1008 = vmatprep.subr.mxu0 0.0
    %1009 = vmatpush1.msra.mxu0 0.0
    %1010 = vmatprep.subr.mxu0 0.0
    %1011 = vmatpush1.msra.mxu0 0.0
    %1012 = vmatprep.subr.mxu0 0.0
    %1013 = vmatpush1.msra.mxu0 %v163
    %1014 = vmatprep.subr.mxu0 0.0
    %1015 = vmatpush2.msra.mxu0 0.0
    %1016 = vmatprep.subr.mxu0 0.0
    %1017 = vmatpush2.msra.mxu0 0.0
    %1018 = vmatprep.subr.mxu0 0.0
    %1019 = vmatpush2.msra.mxu0 0.0
    %1020 = vmatprep.subr.mxu0 0.0
    %1021 = vmatpush2.msra.mxu0 0.0
    %1022 = vmatprep.subr.mxu0 0.0
    %1023 = vmatpush2.msra.mxu0 0.0
    %1024 = vmatprep.subr.mxu0 0.0
    %1025 = vmatpush2.msra.mxu0 0.0
    %1026 = vmatprep.subr.mxu0 0.0
    %1027 = vmatpush2.msra.mxu0 0.0
    %1028 = vmatprep.subr.mxu0 0.0
    %1029 = vmatpush2.msra.mxu0 0.0
    %1030 = vmatprep.subr.mxu0 0.0
    %1031 = vmatpush2.msra.mxu0 0.0
    %1032 = vmatprep.subr.mxu0 0.0
    %1033 = vmatpush2.msra.mxu0 0.0
    %1034 = vmatprep.subr.mxu0 0.0
    %1035 = vmatpush2.msra.mxu0 0.0
    %1036 = vmatprep.subr.mxu0 0.0
    %1037 = vmatpush2.msra.mxu0 0.0
    %1038 = vmatprep.subr.mxu0 0.0
    %1039 = vmatpush2.msra.mxu0 0.0
    %1040 = vmatprep.subr.mxu0 0.0
    %1041 = vmatpush2.msra.mxu0 0.0
    %1042 = vmatprep.subr.mxu0 0.0
    %1043 = vmatpush2.msra.mxu0 0.0
    %1044 = vmatprep.subr.mxu0 0.0
    %1045 = vmatpush2.msra.mxu0 0.0
    %1046 = vmatprep.mubr.f32.mxu0 0.0
    %1047 = vmatmul.mubr.f32.gmra.mxu0 %v980
    %v1048 = vpop.f32.mrf.mxu0
    %v1049 = vadd.f32 0.0, %v1048
    %v1050 = vpop.f32.mrf.mxu0
    %1051 = vdwg.mxu0
    %v1053 = vsel %vm185, %v895, 0
    %1055 = vmatprep.subr.mxu0 0.0
    %1056 = vmatpush1.msra.mxu0 0.0
    %1057 = vmatprep.subr.mxu0 0.0
    %1058 = vmatpush1.msra.mxu0 0.0
    %1059 = vmatprep.subr.mxu0 0.0
    %1060 = vmatpush1.msra.mxu0 0.0
    %1061 = vmatprep.subr.mxu0 0.0
    %1062 = vmatpush1.msra.mxu0 0.0
    %1063 = vmatprep.subr.mxu0 0.0
    %1064 = vmatpush1.msra.mxu0 0.0
    %1065 = vmatprep.subr.mxu0 0.0
    %1066 = vmatpush1.msra.mxu0 0.0
    %1067 = vmatprep.subr.mxu0 0.0
    %1068 = vmatpush1.msra.mxu0 0.0
    %1069 = vmatprep.subr.mxu0 0.0
    %1070 = vmatpush1.msra.mxu0 0.0
    %1071 = vmatprep.subr.mxu0 0.0
    %1072 = vmatpush1.msra.mxu0 0.0
    %1073 = vmatprep.subr.mxu0 0.0
    %1074 = vmatpush1.msra.mxu0 0.0
    %1075 = vmatprep.subr.mxu0 0.0
    %1076 = vmatpush1.msra.mxu0 0.0
    %1077 = vmatprep.subr.mxu0 0.0
    %1078 = vmatpush1.msra.mxu0 0.0
    %1079 = vmatprep.subr.mxu0 0.0
    %1080 = vmatpush1.msra.mxu0 0.0
    %1081 = vmatprep.subr.mxu0 0.0
    %1082 = vmatpush1.msra.mxu0 0.0
    %1083 = vmatprep.subr.mxu0 0.0
    %1084 = vmatpush1.msra.mxu0 0.0
    %1085 = vmatprep.subr.mxu0 0.0
    %1086 = vmatpush1.msra.mxu0 %v166
    %1087 = vmatprep.subr.mxu0 0.0
    %1088 = vmatpush2.msra.mxu0 0.0
    %1089 = vmatprep.subr.mxu0 0.0
    %1090 = vmatpush2.msra.mxu0 0.0
    %1091 = vmatprep.subr.mxu0 0.0
    %1092 = vmatpush2.msra.mxu0 0.0
    %1093 = vmatprep.subr.mxu0 0.0
    %1094 = vmatpush2.msra.mxu0 0.0
    %1095 = vmatprep.subr.mxu0 0.0
    %1096 = vmatpush2.msra.mxu0 0.0
    %1097 = vmatprep.subr.mxu0 0.0
    %1098 = vmatpush2.msra.mxu0 0.0
    %1099 = vmatprep.subr.mxu0 0.0
    %1100 = vmatpush2.msra.mxu0 0.0
    %1101 = vmatprep.subr.mxu0 0.0
    %1102 = vmatpush2.msra.mxu0 0.0
    %1103 = vmatprep.subr.mxu0 0.0
    %1104 = vmatpush2.msra.mxu0 0.0
    %1105 = vmatprep.subr.mxu0 0.0
    %1106 = vmatpush2.msra.mxu0 0.0
    %1107 = vmatprep.subr.mxu0 0.0
    %1108 = vmatpush2.msra.mxu0 0.0
    %1109 = vmatprep.subr.mxu0 0.0
    %1110 = vmatpush2.msra.mxu0 0.0
    %1111 = vmatprep.subr.mxu0 0.0
    %1112 = vmatpush2.msra.mxu0 0.0
    %1113 = vmatprep.subr.mxu0 0.0
    %1114 = vmatpush2.msra.mxu0 0.0
    %1115 = vmatprep.subr.mxu0 0.0
    %1116 = vmatpush2.msra.mxu0 0.0
    %1117 = vmatprep.subr.mxu0 0.0
    %1118 = vmatpush2.msra.mxu0 0.0
    %1119 = vmatprep.mubr.f32.mxu0 0.0
    %1120 = vmatmul.mubr.f32.gmra.mxu0 %v1053
    %v1121 = vpop.f32.mrf.mxu0
    %v1122 = vadd.f32 0.0, %v1121
    %v1123 = vpop.f32.mrf.mxu0
    %1124 = vdwg.mxu0
    %v1126 = vsel %vm185, %v897, 0
    %1128 = vmatprep.subr.mxu0 0.0
    %1129 = vmatpush1.msra.mxu0 0.0
    %1130 = vmatprep.subr.mxu0 0.0
    %1131 = vmatpush1.msra.mxu0 0.0
    %1132 = vmatprep.subr.mxu0 0.0
    %1133 = vmatpush1.msra.mxu0 0.0
    %1134 = vmatprep.subr.mxu0 0.0
    %1135 = vmatpush1.msra.mxu0 0.0
    %1136 = vmatprep.subr.mxu0 0.0
    %1137 = vmatpush1.msra.mxu0 0.0
    %1138 = vmatprep.subr.mxu0 0.0
    %1139 = vmatpush1.msra.mxu0 0.0
    %1140 = vmatprep.subr.mxu0 0.0
    %1141 = vmatpush1.msra.mxu0 0.0
    %1142 = vmatprep.subr.mxu0 0.0
    %1143 = vmatpush1.msra.mxu0 0.0
    %1144 = vmatprep.subr.mxu0 0.0
    %1145 = vmatpush1.msra.mxu0 0.0
    %1146 = vmatprep.subr.mxu0 0.0
    %1147 = vmatpush1.msra.mxu0 0.0
    %1148 = vmatprep.subr.mxu0 0.0
    %1149 = vmatpush1.msra.mxu0 0.0
    %1150 = vmatprep.subr.mxu0 0.0
    %1151 = vmatpush1.msra.mxu0 0.0
    %1152 = vmatprep.subr.mxu0 0.0
    %1153 = vmatpush1.msra.mxu0 0.0
    %1154 = vmatprep.subr.mxu0 0.0
    %1155 = vmatpush1.msra.mxu0 0.0
    %1156 = vmatprep.subr.mxu0 0.0
    %1157 = vmatpush1.msra.mxu0 0.0
    %1158 = vmatprep.subr.mxu0 0.0
    %1159 = vmatpush1.msra.mxu0 %v169
    %1160 = vmatprep.subr.mxu0 0.0
    %1161 = vmatpush2.msra.mxu0 0.0
    %1162 = vmatprep.subr.mxu0 0.0
    %1163 = vmatpush2.msra.mxu0 0.0
    %1164 = vmatprep.subr.mxu0 0.0
    %1165 = vmatpush2.msra.mxu0 0.0
    %1166 = vmatprep.subr.mxu0 0.0
    %1167 = vmatpush2.msra.mxu0 0.0
    %1168 = vmatprep.subr.mxu0 0.0
    %1169 = vmatpush2.msra.mxu0 0.0
    %1170 = vmatprep.subr.mxu0 0.0
    %1171 = vmatpush2.msra.mxu0 0.0
    %1172 = vmatprep.subr.mxu0 0.0
    %1173 = vmatpush2.msra.mxu0 0.0
    %1174 = vmatprep.subr.mxu0 0.0
    %1175 = vmatpush2.msra.mxu0 0.0
    %1176 = vmatprep.subr.mxu0 0.0
    %1177 = vmatpush2.msra.mxu0 0.0
    %1178 = vmatprep.subr.mxu0 0.0
    %1179 = vmatpush2.msra.mxu0 0.0
    %1180 = vmatprep.subr.mxu0 0.0
    %1181 = vmatpush2.msra.mxu0 0.0
    %1182 = vmatprep.subr.mxu0 0.0
    %1183 = vmatpush2.msra.mxu0 0.0
    %1184 = vmatprep.subr.mxu0 0.0
    %1185 = vmatpush2.msra.mxu0 0.0
    %1186 = vmatprep.subr.mxu0 0.0
    %1187 = vmatpush2.msra.mxu0 0.0
    %1188 = vmatprep.subr.mxu0 0.0
    %1189 = vmatpush2.msra.mxu0 0.0
    %1190 = vmatprep.subr.mxu0 0.0
    %1191 = vmatpush2.msra.mxu0 0.0
    %1192 = vmatprep.mubr.f32.mxu0 0.0
    %1193 = vmatmul.mubr.f32.gmra.mxu0 %v1126
    %v1194 = vpop.f32.mrf.mxu0
    %v1195 = vadd.f32 0.0, %v1194
    %v1196 = vpop.f32.mrf.mxu0
    %1197 = vdwg.mxu0
    %v1199 = vsel %vm185, %v899, 0
    %1201 = vmatprep.subr.mxu0 0.0
    %1202 = vmatpush1.msra.mxu0 0.0
    %1203 = vmatprep.subr.mxu0 0.0
    %1204 = vmatpush1.msra.mxu0 0.0
    %1205 = vmatprep.subr.mxu0 0.0
    %1206 = vmatpush1.msra.mxu0 0.0
    %1207 = vmatprep.subr.mxu0 0.0
    %1208 = vmatpush1.msra.mxu0 0.0
    %1209 = vmatprep.subr.mxu0 0.0
    %1210 = vmatpush1.msra.mxu0 0.0
    %1211 = vmatprep.subr.mxu0 0.0
    %1212 = vmatpush1.msra.mxu0 0.0
    %1213 = vmatprep.subr.mxu0 0.0
    %1214 = vmatpush1.msra.mxu0 0.0
    %1215 = vmatprep.subr.mxu0 0.0
    %1216 = vmatpush1.msra.mxu0 0.0
    %1217 = vmatprep.subr.mxu0 0.0
    %1218 = vmatpush1.msra.mxu0 0.0
    %1219 = vmatprep.subr.mxu0 0.0
    %1220 = vmatpush1.msra.mxu0 0.0
    %1221 = vmatprep.subr.mxu0 0.0
    %1222 = vmatpush1.msra.mxu0 0.0
    %1223 = vmatprep.subr.mxu0 0.0
    %1224 = vmatpush1.msra.mxu0 0.0
    %1225 = vmatprep.subr.mxu0 0.0
    %1226 = vmatpush1.msra.mxu0 0.0
    %1227 = vmatprep.subr.mxu0 0.0
    %1228 = vmatpush1.msra.mxu0 0.0
    %1229 = vmatprep.subr.mxu0 0.0
    %1230 = vmatpush1.msra.mxu0 0.0
    %1231 = vmatprep.subr.mxu0 0.0
    %1232 = vmatpush1.msra.mxu0 %v158
    %1233 = vmatprep.subr.mxu0 0.0
    %1234 = vmatpush2.msra.mxu0 0.0
    %1235 = vmatprep.subr.mxu0 0.0
    %1236 = vmatpush2.msra.mxu0 0.0
    %1237 = vmatprep.subr.mxu0 0.0
    %1238 = vmatpush2.msra.mxu0 0.0
    %1239 = vmatprep.subr.mxu0 0.0
    %1240 = vmatpush2.msra.mxu0 0.0
    %1241 = vmatprep.subr.mxu0 0.0
    %1242 = vmatpush2.msra.mxu0 0.0
    %1243 = vmatprep.subr.mxu0 0.0
    %1244 = vmatpush2.msra.mxu0 0.0
    %1245 = vmatprep.subr.mxu0 0.0
    %1246 = vmatpush2.msra.mxu0 0.0
    %1247 = vmatprep.subr.mxu0 0.0
    %1248 = vmatpush2.msra.mxu0 0.0
    %1249 = vmatprep.subr.mxu0 0.0
    %1250 = vmatpush2.msra.mxu0 0.0
    %1251 = vmatprep.subr.mxu0 0.0
    %1252 = vmatpush2.msra.mxu0 0.0
    %1253 = vmatprep.subr.mxu0 0.0
    %1254 = vmatpush2.msra.mxu0 0.0
    %1255 = vmatprep.subr.mxu0 0.0
    %1256 = vmatpush2.msra.mxu0 0.0
    %1257 = vmatprep.subr.mxu0 0.0
    %1258 = vmatpush2.msra.mxu0 0.0
    %1259 = vmatprep.subr.mxu0 0.0
    %1260 = vmatpush2.msra.mxu0 0.0
    %1261 = vmatprep.subr.mxu0 0.0
    %1262 = vmatpush2.msra.mxu0 0.0
    %1263 = vmatprep.subr.mxu0 0.0
    %1264 = vmatpush2.msra.mxu0 0.0
    %1265 = vmatprep.mubr.f32.mxu0 0.0
    %1266 = vmatmul.mubr.f32.gmra.mxu0 %v1199
    %v1267 = vpop.f32.mrf.mxu0
    %v1268 = vadd.f32 0.0, %v1267
    %v1269 = vpop.f32.mrf.mxu0
    %1270 = vdwg.mxu0
    %v1272 = vsel %vm185, %v901, 0
    %1274 = vmatprep.subr.mxu0 0.0
    %1275 = vmatpush1.msra.mxu0 0.0
    %1276 = vmatprep.subr.mxu0 0.0
    %1277 = vmatpush1.msra.mxu0 0.0
    %1278 = vmatprep.subr.mxu0 0.0
    %1279 = vmatpush1.msra.mxu0 0.0
    %1280 = vmatprep.subr.mxu0 0.0
    %1281 = vmatpush1.msra.mxu0 0.0
    %1282 = vmatprep.subr.mxu0 0.0
    %1283 = vmatpush1.msra.mxu0 0.0
    %1284 = vmatprep.subr.mxu0 0.0
    %1285 = vmatpush1.msra.mxu0 0.0
    %1286 = vmatprep.subr.mxu0 0.0
    %1287 = vmatpush1.msra.mxu0 0.0
    %1288 = vmatprep.subr.mxu0 0.0
    %1289 = vmatpush1.msra.mxu0 0.0
    %1290 = vmatprep.subr.mxu0 0.0
    %1291 = vmatpush1.msra.mxu0 0.0
    %1292 = vmatprep.subr.mxu0 0.0
    %1293 = vmatpush1.msra.mxu0 0.0
    %1294 = vmatprep.subr.mxu0 0.0
    %1295 = vmatpush1.msra.mxu0 0.0
    %1296 = vmatprep.subr.mxu0 0.0
    %1297 = vmatpush1.msra.mxu0 0.0
    %1298 = vmatprep.subr.mxu0 0.0
    %1299 = vmatpush1.msra.mxu0 0.0
    %1300 = vmatprep.subr.mxu0 0.0
    %1301 = vmatpush1.msra.mxu0 0.0
    %1302 = vmatprep.subr.mxu0 0.0
    %1303 = vmatpush1.msra.mxu0 0.0
    %1304 = vmatprep.subr.mxu0 0.0
    %1305 = vmatpush1.msra.mxu0 %v173
    %1306 = vmatprep.subr.mxu0 0.0
    %1307 = vmatpush2.msra.mxu0 0.0
    %1308 = vmatprep.subr.mxu0 0.0
    %1309 = vmatpush2.msra.mxu0 0.0
    %1310 = vmatprep.subr.mxu0 0.0
    %1311 = vmatpush2.msra.mxu0 0.0
    %1312 = vmatprep.subr.mxu0 0.0
    %1313 = vmatpush2.msra.mxu0 0.0
    %1314 = vmatprep.subr.mxu0 0.0
    %1315 = vmatpush2.msra.mxu0 0.0
    %1316 = vmatprep.subr.mxu0 0.0
    %1317 = vmatpush2.msra.mxu0 0.0
    %1318 = vmatprep.subr.mxu0 0.0
    %1319 = vmatpush2.msra.mxu0 0.0
    %1320 = vmatprep.subr.mxu0 0.0
    %1321 = vmatpush2.msra.mxu0 0.0
    %1322 = vmatprep.subr.mxu0 0.0
    %1323 = vmatpush2.msra.mxu0 0.0
    %1324 = vmatprep.subr.mxu0 0.0
    %1325 = vmatpush2.msra.mxu0 0.0
    %1326 = vmatprep.subr.mxu0 0.0
    %1327 = vmatpush2.msra.mxu0 0.0
    %1328 = vmatprep.subr.mxu0 0.0
    %1329 = vmatpush2.msra.mxu0 0.0
    %1330 = vmatprep.subr.mxu0 0.0
    %1331 = vmatpush2.msra.mxu0 0.0
    %1332 = vmatprep.subr.mxu0 0.0
    %1333 = vmatpush2.msra.mxu0 0.0
    %1334 = vmatprep.subr.mxu0 0.0
    %1335 = vmatpush2.msra.mxu0 0.0
    %1336 = vmatprep.subr.mxu0 0.0
    %1337 = vmatpush2.msra.mxu0 0.0
    %1338 = vmatprep.mubr.f32.mxu0 0.0
    %1339 = vmatmul.mubr.f32.gmra.mxu0 %v1272
    %v1340 = vpop.f32.mrf.mxu0
    %v1341 = vadd.f32 0.0, %v1340
    %v1342 = vpop.f32.mrf.mxu0
    %1343 = vdwg.mxu0
    %v1345 = vsel %vm185, %v903, 0
    %1347 = vmatprep.subr.mxu0 0.0
    %1348 = vmatpush1.msra.mxu0 0.0
    %1349 = vmatprep.subr.mxu0 0.0
    %1350 = vmatpush1.msra.mxu0 0.0
    %1351 = vmatprep.subr.mxu0 0.0
    %1352 = vmatpush1.msra.mxu0 0.0
    %1353 = vmatprep.subr.mxu0 0.0
    %1354 = vmatpush1.msra.mxu0 0.0
    %1355 = vmatprep.subr.mxu0 0.0
    %1356 = vmatpush1.msra.mxu0 0.0
    %1357 = vmatprep.subr.mxu0 0.0
    %1358 = vmatpush1.msra.mxu0 0.0
    %1359 = vmatprep.subr.mxu0 0.0
    %1360 = vmatpush1.msra.mxu0 0.0
    %1361 = vmatprep.subr.mxu0 0.0
    %1362 = vmatpush1.msra.mxu0 0.0
    %1363 = vmatprep.subr.mxu0 0.0
    %1364 = vmatpush1.msra.mxu0 0.0
    %1365 = vmatprep.subr.mxu0 0.0
    %1366 = vmatpush1.msra.mxu0 0.0
    %1367 = vmatprep.subr.mxu0 0.0
    %1368 = vmatpush1.msra.mxu0 0.0
    %1369 = vmatprep.subr.mxu0 0.0
    %1370 = vmatpush1.msra.mxu0 0.0
    %1371 = vmatprep.subr.mxu0 0.0
    %1372 = vmatpush1.msra.mxu0 0.0
    %1373 = vmatprep.subr.mxu0 0.0
    %1374 = vmatpush1.msra.mxu0 0.0
    %1375 = vmatprep.subr.mxu0 0.0
    %1376 = vmatpush1.msra.mxu0 0.0
    %1377 = vmatprep.subr.mxu0 0.0
    %1378 = vmatpush1.msra.mxu0 %v176
    %1379 = vmatprep.subr.mxu0 0.0
    %1380 = vmatpush2.msra.mxu0 0.0
    %1381 = vmatprep.subr.mxu0 0.0
    %1382 = vmatpush2.msra.mxu0 0.0
    %1383 = vmatprep.subr.mxu0 0.0
    %1384 = vmatpush2.msra.mxu0 0.0
    %1385 = vmatprep.subr.mxu0 0.0
    %1386 = vmatpush2.msra.mxu0 0.0
    %1387 = vmatprep.subr.mxu0 0.0
    %1388 = vmatpush2.msra.mxu0 0.0
    %1389 = vmatprep.subr.mxu0 0.0
    %1390 = vmatpush2.msra.mxu0 0.0
    %1391 = vmatprep.subr.mxu0 0.0
    %1392 = vmatpush2.msra.mxu0 0.0
    %1393 = vmatprep.subr.mxu0 0.0
    %1394 = vmatpush2.msra.mxu0 0.0
    %1395 = vmatprep.subr.mxu0 0.0
    %1396 = vmatpush2.msra.mxu0 0.0
    %1397 = vmatprep.subr.mxu0 0.0
    %1398 = vmatpush2.msra.mxu0 0.0
    %1399 = vmatprep.subr.mxu0 0.0
    %1400 = vmatpush2.msra.mxu0 0.0
    %1401 = vmatprep.subr.mxu0 0.0
    %1402 = vmatpush2.msra.mxu0 0.0
    %1403 = vmatprep.subr.mxu0 0.0
    %1404 = vmatpush2.msra.mxu0 0.0
    %1405 = vmatprep.subr.mxu0 0.0
    %1406 = vmatpush2.msra.mxu0 0.0
    %1407 = vmatprep.subr.mxu0 0.0
    %1408 = vmatpush2.msra.mxu0 0.0
    %1409 = vmatprep.subr.mxu0 0.0
    %1410 = vmatpush2.msra.mxu0 0.0
    %1411 = vmatprep.mubr.f32.mxu0 0.0
    %1412 = vmatmul.mubr.f32.gmra.mxu0 %v1345
    %v1413 = vpop.f32.mrf.mxu0
    %v1414 = vadd.f32 0.0, %v1413
    %v1415 = vpop.f32.mrf.mxu0
    %1416 = vdwg.mxu0
    %v1418 = vsel %vm185, %v905, 0
    %1420 = vmatprep.subr.mxu0 0.0
    %1421 = vmatpush1.msra.mxu0 0.0
    %1422 = vmatprep.subr.mxu0 0.0
    %1423 = vmatpush1.msra.mxu0 0.0
    %1424 = vmatprep.subr.mxu0 0.0
    %1425 = vmatpush1.msra.mxu0 0.0
    %1426 = vmatprep.subr.mxu0 0.0
    %1427 = vmatpush1.msra.mxu0 0.0
    %1428 = vmatprep.subr.mxu0 0.0
    %1429 = vmatpush1.msra.mxu0 0.0
    %1430 = vmatprep.subr.mxu0 0.0
    %1431 = vmatpush1.msra.mxu0 0.0
    %1432 = vmatprep.subr.mxu0 0.0
    %1433 = vmatpush1.msra.mxu0 0.0
    %1434 = vmatprep.subr.mxu0 0.0
    %1435 = vmatpush1.msra.mxu0 0.0
    %1436 = vmatprep.subr.mxu0 0.0
    %1437 = vmatpush1.msra.mxu0 0.0
    %1438 = vmatprep.subr.mxu0 0.0
    %1439 = vmatpush1.msra.mxu0 0.0
    %1440 = vmatprep.subr.mxu0 0.0
    %1441 = vmatpush1.msra.mxu0 0.0
    %1442 = vmatprep.subr.mxu0 0.0
    %1443 = vmatpush1.msra.mxu0 0.0
    %1444 = vmatprep.subr.mxu0 0.0
    %1445 = vmatpush1.msra.mxu0 0.0
    %1446 = vmatprep.subr.mxu0 0.0
    %1447 = vmatpush1.msra.mxu0 0.0
    %1448 = vmatprep.subr.mxu0 0.0
    %1449 = vmatpush1.msra.mxu0 0.0
    %1450 = vmatprep.subr.mxu0 0.0
    %1451 = vmatpush1.msra.mxu0 %v179
    %1452 = vmatprep.subr.mxu0 0.0
    %1453 = vmatpush2.msra.mxu0 0.0
    %1454 = vmatprep.subr.mxu0 0.0
    %1455 = vmatpush2.msra.mxu0 0.0
    %1456 = vmatprep.subr.mxu0 0.0
    %1457 = vmatpush2.msra.mxu0 0.0
    %1458 = vmatprep.subr.mxu0 0.0
    %1459 = vmatpush2.msra.mxu0 0.0
    %1460 = vmatprep.subr.mxu0 0.0
    %1461 = vmatpush2.msra.mxu0 0.0
    %1462 = vmatprep.subr.mxu0 0.0
    %1463 = vmatpush2.msra.mxu0 0.0
    %1464 = vmatprep.subr.mxu0 0.0
    %1465 = vmatpush2.msra.mxu0 0.0
    %1466 = vmatprep.subr.mxu0 0.0
    %1467 = vmatpush2.msra.mxu0 0.0
    %1468 = vmatprep.subr.mxu0 0.0
    %1469 = vmatpush2.msra.mxu0 0.0
    %1470 = vmatprep.subr.mxu0 0.0
    %1471 = vmatpush2.msra.mxu0 0.0
    %1472 = vmatprep.subr.mxu0 0.0
    %1473 = vmatpush2.msra.mxu0 0.0
    %1474 = vmatprep.subr.mxu0 0.0
    %1475 = vmatpush2.msra.mxu0 0.0
    %1476 = vmatprep.subr.mxu0 0.0
    %1477 = vmatpush2.msra.mxu0 0.0
    %1478 = vmatprep.subr.mxu0 0.0
    %1479 = vmatpush2.msra.mxu0 0.0
    %1480 = vmatprep.subr.mxu0 0.0
    %1481 = vmatpush2.msra.mxu0 0.0
    %1482 = vmatprep.subr.mxu0 0.0
    %1483 = vmatpush2.msra.mxu0 0.0
    %1484 = vmatprep.mubr.f32.mxu0 0.0
    %1485 = vmatmul.mubr.f32.gmra.mxu0 %v1418
    %v1486 = vpop.f32.mrf.mxu0
    %v1487 = vadd.f32 0.0, %v1486
    %v1488 = vpop.f32.mrf.mxu0
    %1489 = vdwg.mxu0
    %1490 = vst.msk [vmem:[#allocation2] sm:$0xff] %vm185, %v976
    %1492 = vrot.lane.b32.xlu0 %v1049, 8
    %v1493 = vpop.permute.xlu0 %1492
    %vm1495 = vcmask 130112
    %1496 = vst.msk [vmem:[#allocation2] sm:$0xff] %vm1495, %v1493
    %1498 = vrot.lane.b32.xlu0 %v1122, 16
    %v1499 = vpop.permute.xlu0 %1498
    %vm1501 = vcmask 195712
    %1502 = vst.msk [vmem:[#allocation2] sm:$0xff] %vm1501, %v1499
    %1504 = vrot.lane.b32.xlu0 %v1195, 24
    %v1505 = vpop.permute.xlu0 %1504
    %vm1507 = vcmask 261312
    %1508 = vst.msk [vmem:[#allocation2] sm:$0xff] %vm1507, %v1505
    %1509 = vst.msk [vmem:[#allocation2 + $0x8] sm:$0xff] %vm185, %v1268
    %1511 = vrot.lane.b32.xlu0 %v1341, 8
    %v1512 = vpop.permute.xlu0 %1511
    %1514 = vst.msk [vmem:[#allocation2 + $0x8] sm:$0xff] %vm1495, %v1512
    %1516 = vrot.lane.b32.xlu0 %v1414, 16
    %v1517 = vpop.permute.xlu0 %1516
    %1519 = vst.msk [vmem:[#allocation2 + $0x8] sm:$0xff] %vm1501, %v1517
    %1521 = vrot.lane.b32.xlu0 %v1487, 24
    %v1522 = vpop.permute.xlu0 %1521
    %1524 = vst.msk [vmem:[#allocation2 + $0x8] sm:$0xff] %vm1507, %v1522
    %v1525 = vld [vmem:[#allocation2] sm:$0xff]
    %v1526 = vld [vmem:[#allocation2 + $0x8] sm:$0xff]
    %v1527 = vld [vmem:[#allocation8] sm:$0xff]
    %v1528 = vld [vmem:[#allocation8 + $0x8] sm:$0xff]
    %v1529 = vld [vmem:[#allocation8 + $0x10] sm:$0xff]
    %v1530 = vld [vmem:[#allocation8 + $0x18] sm:$0xff]
    %v1531 = vld [vmem:[%s5] sm:$0xff]
    %1532 = vrot.lane.b32.xlu0 %v65, 64
    %v1533 = vpop.permute.xlu0 %1532
    %1534 = vrot.lane.b32.xlu0 %v66, 64
    %v1535 = vpop.permute.xlu0 %1534
    %vm1538 = vcmask 261120
    %v1540 = vsel %vm1538, %v1525, 0
    %v1543 = vsel %vm1538, %v1526, 0
    %1545 = vmatprep.subr.mxu0 0.0
    %1546 = vmatpush1.msra.mxu0 0.0
    %1547 = vmatprep.subr.mxu0 0.0
    %1548 = vmatpush1.msra.mxu0 0.0
    %1549 = vmatprep.subr.mxu0 0.0
    %1550 = vmatpush1.msra.mxu0 0.0
    %1551 = vmatprep.subr.mxu0 0.0
    %1552 = vmatpush1.msra.mxu0 0.0
    %1553 = vmatprep.subr.mxu0 0.0
    %1554 = vmatpush1.msra.mxu0 0.0
    %1555 = vmatprep.subr.mxu0 0.0
    %1556 = vmatpush1.msra.mxu0 0.0
    %1557 = vmatprep.subr.mxu0 0.0
    %1558 = vmatpush1.msra.mxu0 0.0
    %1559 = vmatprep.subr.mxu0 0.0
    %1560 = vmatpush1.msra.mxu0 0.0
    %1561 = vmatprep.subr.mxu0 0.0
    %1562 = vmatpush1.msra.mxu0 0.0
    %1563 = vmatprep.subr.mxu0 0.0
    %1564 = vmatpush1.msra.mxu0 0.0
    %1565 = vmatprep.subr.mxu0 0.0
    %1566 = vmatpush1.msra.mxu0 0.0
    %1567 = vmatprep.subr.mxu0 0.0
    %1568 = vmatpush1.msra.mxu0 0.0
    %1569 = vmatprep.subr.mxu0 0.0
    %1570 = vmatpush1.msra.mxu0 %v1530
    %1571 = vmatprep.subr.mxu0 0.0
    %1572 = vmatpush1.msra.mxu0 %v1529
    %1573 = vmatprep.subr.mxu0 0.0
    %1574 = vmatpush1.msra.mxu0 %v1528
    %1575 = vmatprep.subr.mxu0 0.0
    %1576 = vmatpush1.msra.mxu0 %v1527
    %1577 = vmatprep.subr.mxu0 0.0
    %1578 = vmatpush2.msra.mxu0 0.0
    %1579 = vmatprep.subr.mxu0 0.0
    %1580 = vmatpush2.msra.mxu0 0.0
    %1581 = vmatprep.subr.mxu0 0.0
    %1582 = vmatpush2.msra.mxu0 0.0
    %1583 = vmatprep.subr.mxu0 0.0
    %1584 = vmatpush2.msra.mxu0 0.0
    %1585 = vmatprep.subr.mxu0 0.0
    %1586 = vmatpush2.msra.mxu0 0.0
    %1587 = vmatprep.subr.mxu0 0.0
    %1588 = vmatpush2.msra.mxu0 0.0
    %1589 = vmatprep.subr.mxu0 0.0
    %1590 = vmatpush2.msra.mxu0 0.0
    %1591 = vmatprep.subr.mxu0 0.0
    %1592 = vmatpush2.msra.mxu0 0.0
    %1593 = vmatprep.subr.mxu0 0.0
    %1594 = vmatpush2.msra.mxu0 0.0
    %1595 = vmatprep.subr.mxu0 0.0
    %1596 = vmatpush2.msra.mxu0 0.0
    %1597 = vmatprep.subr.mxu0 0.0
    %1598 = vmatpush2.msra.mxu0 0.0
    %1599 = vmatprep.subr.mxu0 0.0
    %1600 = vmatpush2.msra.mxu0 0.0
    %1601 = vmatprep.subr.mxu0 0.0
    %1602 = vmatpush2.msra.mxu0 0.0
    %1603 = vmatprep.subr.mxu0 0.0
    %1604 = vmatpush2.msra.mxu0 0.0
    %1605 = vmatprep.subr.mxu0 0.0
    %1606 = vmatpush2.msra.mxu0 0.0
    %1607 = vmatprep.subr.mxu0 0.0
    %1608 = vmatpush2.msra.mxu0 0.0
    %1609 = vmatprep.mubr.f32.mxu0 0.0
    %1610 = vmatmul.mubr.f32.gmra.mxu0 %v1540
    %v1611 = vpop.f32.mrf.mxu0
    %v1612 = vadd.f32 %v1533, %v1611
    %v1613 = vpop.f32.mrf.mxu0
    %1614 = vmatprep.mubr.f32.mxu0 0.0
    %1615 = vmatmul.mubr.f32.gmra.mxu0 %v1543
    %v1616 = vpop.f32.mrf.mxu0
    %v1617 = vadd.f32 %v1535, %v1616
    %v1618 = vpop.f32.mrf.mxu0
    %1619 = vdwg.mxu0
    %v1620 = vsel %vm1538, %v1612, 0.0
    %1621 = vadd.xlane.f32.xlu0 %v1620
    %v1622 = vpop.xlane.xlu0 %1621
    %v1623 = vsel %vm1538, %v1617, 0.0
    %1624 = vadd.xlane.f32.xlu0 %v1623
    %v1625 = vpop.xlane.xlu0 %1624
    %v1626 = vrcp.pop 32.0
    %v1627 = vmul.f32 %v1622, %v1626
    %v1628 = vmul.f32 %v1625, %v1626
    %v1629 = vsub.f32 %v1612, %v1627
    %v1630 = vsub.f32 %v1617, %v1628
    %v1631 = vmul.f32 %v1629, %v1629
    %v1632 = vmul.f32 %v1630, %v1630
    %v1633 = vsel %vm1538, %v1631, 0.0
    %1634 = vadd.xlane.f32.xlu0 %v1633
    %v1635 = vpop.xlane.xlu0 %1634
    %v1636 = vsel %vm1538, %v1632, 0.0
    %1637 = vadd.xlane.f32.xlu0 %v1636
    %v1638 = vpop.xlane.xlu0 %1637
    %v1639 = vmul.f32 %v1635, %v1626
    %v1640 = vmul.f32 %v1638, %v1626
    %v1641 = vadd.f32 %v1639, 1e-05
    %v1642 = vadd.f32 %v1640, 1e-05
    %v1643 = vrsqrt.pop %v1641
    %v1644 = vrsqrt.pop %v1642
    %v1645 = vmul.f32 %v1629, %v1643
    %v1646 = vmul.f32 %v1630, %v1644
    %v1647 = vlaneseq
    %v1648 = vshrl.u32 %v1647, 7
    %v1649 = vsub.s32 0, %v1648
    %v1650 = vrot.slane %v1531, %v1649
    %v1651 = vmul.f32 %v1645, %v1650
    %v1652 = vmul.f32 %v1646, %v1650
    %v1653 = vlaneseq
    %v1654 = vshrl.u32 %v1653, 7
    %v1655 = vsub.s32 1, %v1654
    %v1656 = vrot.slane %v1531, %v1655
    %v1657 = vadd.f32 %v1651, %v1656
    %v1658 = vadd.f32 %v1652, %v1656
    %v1659 = vlaneseq
    %v1660 = vshrl.u32 %v1659, 7
    %v1661 = vsub.s32 5, %v1660
    %v1662 = vrot.slane %v1531, %v1661
    %1667 = vrot.lane.b32.xlu0 %v1527, 96
    %v1668 = vpop.permute.xlu0 %1667
    %1669 = vrot.lane.b32.xlu0 %v1528, 96
    %v1670 = vpop.permute.xlu0 %1669
    %1671 = vrot.lane.b32.xlu0 %v1529, 96
    %v1672 = vpop.permute.xlu0 %1671
    %1673 = vrot.lane.b32.xlu0 %v1530, 96
    %v1674 = vpop.permute.xlu0 %1673
    %v1680 = vsel %vm1538, %v1657, 0
    %v1683 = vsel %vm1538, %v1658, 0
    %1685 = vmatprep.subr.mxu0 0.0
    %1686 = vmatpush1.msra.mxu0 0.0
    %1687 = vmatprep.subr.mxu0 0.0
    %1688 = vmatpush1.msra.mxu0 0.0
    %1689 = vmatprep.subr.mxu0 0.0
    %1690 = vmatpush1.msra.mxu0 0.0
    %1691 = vmatprep.subr.mxu0 0.0
    %1692 = vmatpush1.msra.mxu0 0.0
    %1693 = vmatprep.subr.mxu0 0.0
    %1694 = vmatpush1.msra.mxu0 0.0
    %1695 = vmatprep.subr.mxu0 0.0
    %1696 = vmatpush1.msra.mxu0 0.0
    %1697 = vmatprep.subr.mxu0 0.0
    %1698 = vmatpush1.msra.mxu0 0.0
    %1699 = vmatprep.subr.mxu0 0.0
    %1700 = vmatpush1.msra.mxu0 0.0
    %1701 = vmatprep.subr.mxu0 0.0
    %1702 = vmatpush1.msra.mxu0 0.0
    %1703 = vmatprep.subr.mxu0 0.0
    %1704 = vmatpush1.msra.mxu0 0.0
    %1705 = vmatprep.subr.mxu0 0.0
    %1706 = vmatpush1.msra.mxu0 0.0
    %1707 = vmatprep.subr.mxu0 0.0
    %1708 = vmatpush1.msra.mxu0 0.0
    %1709 = vmatprep.subr.mxu0 0.0
    %1710 = vmatpush1.msra.mxu0 %v1674
    %1711 = vmatprep.subr.mxu0 0.0
    %1712 = vmatpush1.msra.mxu0 %v1672
    %1713 = vmatprep.subr.mxu0 0.0
    %1714 = vmatpush1.msra.mxu0 %v1670
    %1715 = vmatprep.subr.mxu0 0.0
    %1716 = vmatpush1.msra.mxu0 %v1668
    %1717 = vmatprep.subr.mxu0 0.0
    %1718 = vmatpush2.msra.mxu0 0.0
    %1719 = vmatprep.subr.mxu0 0.0
    %1720 = vmatpush2.msra.mxu0 0.0
    %1721 = vmatprep.subr.mxu0 0.0
    %1722 = vmatpush2.msra.mxu0 0.0
    %1723 = vmatprep.subr.mxu0 0.0
    %1724 = vmatpush2.msra.mxu0 0.0
    %1725 = vmatprep.subr.mxu0 0.0
    %1726 = vmatpush2.msra.mxu0 0.0
    %1727 = vmatprep.subr.mxu0 0.0
    %1728 = vmatpush2.msra.mxu0 0.0
    %1729 = vmatprep.subr.mxu0 0.0
    %1730 = vmatpush2.msra.mxu0 0.0
    %1731 = vmatprep.subr.mxu0 0.0
    %1732 = vmatpush2.msra.mxu0 0.0
    %1733 = vmatprep.subr.mxu0 0.0
    %1734 = vmatpush2.msra.mxu0 0.0
    %1735 = vmatprep.subr.mxu0 0.0
    %1736 = vmatpush2.msra.mxu0 0.0
    %1737 = vmatprep.subr.mxu0 0.0
    %1738 = vmatpush2.msra.mxu0 0.0
    %1739 = vmatprep.subr.mxu0 0.0
    %1740 = vmatpush2.msra.mxu0 0.0
    %1741 = vmatprep.subr.mxu0 0.0
    %1742 = vmatpush2.msra.mxu0 0.0
    %1743 = vmatprep.subr.mxu0 0.0
    %1744 = vmatpush2.msra.mxu0 0.0
    %1745 = vmatprep.subr.mxu0 0.0
    %1746 = vmatpush2.msra.mxu0 0.0
    %1747 = vmatprep.subr.mxu0 0.0
    %1748 = vmatpush2.msra.mxu0 0.0
    %1749 = vmatprep.mubr.f32.mxu0 0.0
    %1750 = vmatmul.mubr.f32.gmra.mxu0 %v1680
    %v1751 = vpop.f32.mrf.mxu0
    %v1752 = vadd.f32 %v1662, %v1751
    %v1753 = vpop.f32.mrf.mxu0
    %1754 = vmatprep.mubr.f32.mxu0 0.0
    %1755 = vmatmul.mubr.f32.gmra.mxu0 %v1683
    %v1756 = vpop.f32.mrf.mxu0
    %v1757 = vadd.f32 %v1662, %v1756
    %v1758 = vpop.f32.mrf.mxu0
    %1759 = vdwg.mxu0
    %v1760 = vmax.f32 %v1752, 0.0
    %v1761 = vmax.f32 %v1757, 0.0
    %v1762 = vld [vmem:[%s4] sm:$0xff]
    %v1763 = vld [vmem:[%s4 + $0x8] sm:$0xff]
    %v1764 = vld [vmem:[%s4 + $0x10] sm:$0xff]
    %v1765 = vld [vmem:[%s4 + $0x18] sm:$0xff]
    %v1766 = vld [vmem:[%s4 + $0x20] sm:$0xff]
    %v1767 = vld [vmem:[%s4 + $0x28] sm:$0xff]
    %v1768 = vld [vmem:[%s4 + $0x30] sm:$0xff]
    %v1769 = vld [vmem:[%s4 + $0x38] sm:$0xff]
    %v1770 = vlaneseq
    %v1771 = vshrl.u32 %v1770, 7
    %v1772 = vsub.s32 4, %v1771
    %v1773 = vrot.slane %v1531, %v1772
    %vm1774 = vcmask 523264
    %v1776 = vsel %vm1774, %v1760, 0
    %v1779 = vsel %vm1774, %v1761, 0
    %1781 = vmatprep.subr.mxu0 0.0
    %1782 = vmatpush1.msra.mxu0 0.0
    %1783 = vmatprep.subr.mxu0 0.0
    %1784 = vmatpush1.msra.mxu0 0.0
    %1785 = vmatprep.subr.mxu0 0.0
    %1786 = vmatpush1.msra.mxu0 0.0
    %1787 = vmatprep.subr.mxu0 0.0
    %1788 = vmatpush1.msra.mxu0 0.0
    %1789 = vmatprep.subr.mxu0 0.0
    %1790 = vmatpush1.msra.mxu0 0.0
    %1791 = vmatprep.subr.mxu0 0.0
    %1792 = vmatpush1.msra.mxu0 0.0
    %1793 = vmatprep.subr.mxu0 0.0
    %1794 = vmatpush1.msra.mxu0 0.0
    %1795 = vmatprep.subr.mxu0 0.0
    %1796 = vmatpush1.msra.mxu0 0.0
    %1797 = vmatprep.subr.mxu0 0.0
    %1798 = vmatpush1.msra.mxu0 %v1769
    %1799 = vmatprep.subr.mxu0 0.0
    %1800 = vmatpush1.msra.mxu0 %v1768
    %1801 = vmatprep.subr.mxu0 0.0
    %1802 = vmatpush1.msra.mxu0 %v1767
    %1803 = vmatprep.subr.mxu0 0.0
    %1804 = vmatpush1.msra.mxu0 %v1766
    %1805 = vmatprep.subr.mxu0 0.0
    %1806 = vmatpush1.msra.mxu0 %v1765
    %1807 = vmatprep.subr.mxu0 0.0
    %1808 = vmatpush1.msra.mxu0 %v1764
    %1809 = vmatprep.subr.mxu0 0.0
    %1810 = vmatpush1.msra.mxu0 %v1763
    %1811 = vmatprep.subr.mxu0 0.0
    %1812 = vmatpush1.msra.mxu0 %v1762
    %1813 = vmatprep.subr.mxu0 0.0
    %1814 = vmatpush2.msra.mxu0 0.0
    %1815 = vmatprep.subr.mxu0 0.0
    %1816 = vmatpush2.msra.mxu0 0.0
    %1817 = vmatprep.subr.mxu0 0.0
    %1818 = vmatpush2.msra.mxu0 0.0
    %1819 = vmatprep.subr.mxu0 0.0
    %1820 = vmatpush2.msra.mxu0 0.0
    %1821 = vmatprep.subr.mxu0 0.0
    %1822 = vmatpush2.msra.mxu0 0.0
    %1823 = vmatprep.subr.mxu0 0.0
    %1824 = vmatpush2.msra.mxu0 0.0
    %1825 = vmatprep.subr.mxu0 0.0
    %1826 = vmatpush2.msra.mxu0 0.0
    %1827 = vmatprep.subr.mxu0 0.0
    %1828 = vmatpush2.msra.mxu0 0.0
    %1829 = vmatprep.subr.mxu0 0.0
    %1830 = vmatpush2.msra.mxu0 0.0
    %1831 = vmatprep.subr.mxu0 0.0
    %1832 = vmatpush2.msra.mxu0 0.0
    %1833 = vmatprep.subr.mxu0 0.0
    %1834 = vmatpush2.msra.mxu0 0.0
    %1835 = vmatprep.subr.mxu0 0.0
    %1836 = vmatpush2.msra.mxu0 0.0
    %1837 = vmatprep.subr.mxu0 0.0
    %1838 = vmatpush2.msra.mxu0 0.0
    %1839 = vmatprep.subr.mxu0 0.0
    %1840 = vmatpush2.msra.mxu0 0.0
    %1841 = vmatprep.subr.mxu0 0.0
    %1842 = vmatpush2.msra.mxu0 0.0
    %1843 = vmatprep.subr.mxu0 0.0
    %1844 = vmatpush2.msra.mxu0 0.0
    %1845 = vmatprep.mubr.f32.mxu0 0.0
    %1846 = vmatmul.mubr.f32.gmra.mxu0 %v1776
    %v1847 = vpop.f32.mrf.mxu0
    %v1848 = vadd.f32 %v1773, %v1847
    %v1849 = vpop.f32.mrf.mxu0
    %1850 = vmatprep.mubr.f32.mxu0 0.0
    %1851 = vmatmul.mubr.f32.gmra.mxu0 %v1779
    %v1852 = vpop.f32.mrf.mxu0
    %v1853 = vadd.f32 %v1773, %v1852
    %v1854 = vpop.f32.mrf.mxu0
    %1855 = vdwg.mxu0
    %v1856 = vadd.f32 %v1848, %v1657
    %v1857 = vadd.f32 %v1853, %v1658
    %v1858 = vsel %vm1538, %v1856, 0.0
    %1859 = vadd.xlane.f32.xlu0 %v1858
    %v1860 = vpop.xlane.xlu0 %1859
    %v1861 = vsel %vm1538, %v1857, 0.0
    %1862 = vadd.xlane.f32.xlu0 %v1861
    %v1863 = vpop.xlane.xlu0 %1862
    %v1864 = vmul.f32 %v1860, %v1626
    %v1865 = vmul.f32 %v1863, %v1626
    %v1866 = vsub.f32 %v1856, %v1864
    %v1867 = vsub.f32 %v1857, %v1865
    %v1868 = vmul.f32 %v1866, %v1866
    %v1869 = vmul.f32 %v1867, %v1867
    %v1870 = vsel %vm1538, %v1868, 0.0
    %1871 = vadd.xlane.f32.xlu0 %v1870
    %v1872 = vpop.xlane.xlu0 %1871
    %v1873 = vsel %vm1538, %v1869, 0.0
    %1874 = vadd.xlane.f32.xlu0 %v1873
    %v1875 = vpop.xlane.xlu0 %1874
    %v1876 = vmul.f32 %v1872, %v1626
    %v1877 = vmul.f32 %v1875, %v1626
    %v1878 = vadd.f32 %v1876, 1e-05
    %v1879 = vadd.f32 %v1877, 1e-05
    %v1880 = vrsqrt.pop %v1878
    %v1881 = vrsqrt.pop %v1879
    %v1882 = vmul.f32 %v1866, %v1880
    %v1883 = vmul.f32 %v1867, %v1881
    %v1884 = vlaneseq
    %v1885 = vshrl.u32 %v1884, 7
    %v1886 = vsub.s32 2, %v1885
    %v1887 = vrot.slane %v1531, %v1886
    %v1888 = vmul.f32 %v1882, %v1887
    %v1889 = vmul.f32 %v1883, %v1887
    %v1890 = vlaneseq
    %v1891 = vshrl.u32 %v1890, 7
    %v1892 = vsub.s32 3, %v1891
    %v1893 = vrot.slane %v1531, %v1892
    %v1894 = vadd.f32 %v1888, %v1893
    %v1895 = vadd.f32 %v1889, %v1893
    %1896 = vst.msk [vmem:[#allocation9] sm:$0xff] %vm1538, %v1894
    %1897 = vst.msk [vmem:[#allocation9 + $0x8] sm:$0xff] %vm1538, %v1895
    // Predicated region
    $region38: #{tpu_custom_call.1} parent=1 // pred_check
      _
    $region39: #{tpu_custom_call.1} parent=1 // pred_check_branch
      %1899 = sbr.rel (0) target = $region41
    $region40: #{tpu_custom_call.1} parent=1 // pred_region
      %s1901 = ssub.s32 256, 256
      %1902 = vsyncadd [#allocation5], %s1901
      %s1903 = sshll.u32 [#allocation9], 4
      %s1904 = int_to_ptr.vmem [resolvable:$true] %s1903
      %1909 = dma.vmem_to_hbm [thread:$0]  %s1904, 256, %s6, [#allocation5], 128, 128, 8
    $region41: #{tpu_custom_call.1} parent=1 // pred_fallthru
      _
    // Predicated region
    $region42: #{tpu_custom_call.1} parent=1 // pred_check
      _
    $region43: #{tpu_custom_call.1} parent=1 // pred_check_branch
      %1911 = sbr.rel (0) target = $region45
    $region44: #{tpu_custom_call.1} parent=1 // pred_region
      %1912 = dma.done [#allocation5], 256
    $region45: #{tpu_custom_call.1} parent=1 // pred_fallthru
      _
    %1913 = vsyncpa [#allocation4], 1
    %1914 = vsyncpa [#allocation7], 1
    %1915 = vsyncpa [#allocation5], 1

</llo_original>
